<compile_context>
chip_gen: v7x
topology: tpu7x:2x2x1
jax: 0.10.0
libtpu: 0.0.40
codegen_flags: <defaults>
</compile_context>

<pallas_src>
import functools
import math

import jax
import jax.numpy as jnp
import numpy as np
from jax.experimental import pallas as pl
from jax.experimental.pallas import tpu as pltpu

# ----------------------------------------------------------------------------
# static layout constants
# ----------------------------------------------------------------------------
X_DIM = 24
FEATURE_SPLITS = (24, 16, 32, 16, 4, 4, 16, 8)  # torch.cat order: x,sent,hist,cc,mev,gas,liq,tok

# (input key, in_dim, hidden_dim, out_dim, w1, b1, w2, b2) for the six branch MLPs
BRANCHES = (
    ("sentiment",        8, 32, 16, "sw1",  "sb1",  "sw2",  "sb2"),
    ("cross_chain",     12, 32, 16, "ccw1", "ccb1", "ccw2", "ccb2"),
    ("mev",              8, 32,  4, "mw1",  "mb1",  "mw2",  "mb2"),
    ("gas",              6, 24,  4, "gw1",  "gb1",  "gw2",  "gb2"),
    ("liquidity",       10, 32, 16, "lw1",  "lb1",  "lw2",  "lb2"),
    ("token_economics", 12, 32,  8, "tw1",  "tb1",  "tw2",  "tb2"),
)
BR_IN = sum(b[1] for b in BRANCHES)     # 56
BR_HID = sum(b[2] for b in BRANCHES)    # 184
BR_HID_PAD = 256                        # padded so v5e sees clean 128-lane MXU tiles
BR_OUT = sum(b[3] for b in BRANCHES)    # 64

# ---- main weight slab, 128 lanes (row offsets) ----
OFF_WX0 = 0            # rows 0:8    LSTM layer-0 input weight, fused gates i|f|g|o
ROW_B0 = 8             # layer-0 fused gate bias (b_ih + b_hh)
ROW_B1 = 9             # layer-1 fused gate bias
ROW_NB1 = 10           # main layer-1 bias (+ folded branch layer-2 bias contribution)
ROW_NB2 = 11           # main layer-2 bias (lanes 0:64)
ROW_NB3 = 12           # main layer-3 bias (lanes 0:3)
ROW_GSC = 13           # gate lane-scale row: 2.0 on g lanes (64:96), 1.0 elsewhere
OFF_W1XH = 16          # rows 16:72   main W1 rows for [x(24) | hist(32)]
OFF_W2 = 72            # rows 72:200  main W2 (128 -> 64), lane-padded to 128
OFF_W3 = 200           # rows 200:264 main W3 (64 -> 3), lane-padded to 128
OFF_W1B = 264          # rows 264:520 (branch Wb2 @ W1_branch-rows), padded 184 -> 256 rows
N_ROWS = 520

# ---- wide weight slab, 256 lanes (row offsets) ----
WIDE_WB1 = 0           # rows 0:56   block-diagonal branch layer-1 (56 -> 184, lanes 0:184)
WIDE_BB1 = 56          # row 56      branch layer-1 bias
WIDE_WREC = 64         # rows 64:128 skewed LSTM recurrent weight: [Whh0|Wih1 ; 0|Whh1]
WIDE_ROWS = 128


# ----------------------------------------------------------------------------
# Pallas kernel: one grid step = one chunk of B requests, weights resident in VMEM
# ----------------------------------------------------------------------------
def _kernel(vec_ref, hist_ref, w_ref, wide_ref, out_ref):
    B = vec_ref.shape[0]
    f32 = jnp.float32

    def mm(a, w):  # bf16 x bf16 MXU pass, f32 accumulation
        return jnp.dot(a.astype(jnp.bfloat16), w, preferred_element_type=f32)

    vec = vec_ref[...]                                           # (B,128) [x | branch inputs | 0]
    hist = hist_ref[...]                                         # (8B,8)  timestep-major

    # ---- six branch MLPs, layer-1 as one block-diagonal matmul on 256 lanes -----------------
    br_bias = wide_ref[WIDE_BB1:WIDE_BB1 + 1, :].astype(f32)
    h_br = jnp.maximum(
        mm(vec[:, X_DIM:X_DIM + BR_IN], wide_ref[WIDE_WB1:WIDE_WB1 + BR_IN, :]) + br_bias, 0.0
    )                                                            # (B,256), lanes 184:256 == 0

    # ---- LSTM layer-0 input contribution for all 8 timesteps in one MXU pass ----------------
    b0 = w_ref[ROW_B0:ROW_B0 + 1, :].astype(f32)
    pre0 = mm(hist, w_ref[OFF_WX0:OFF_WX0 + 8, :]) + b0          # (8B,128)

    # constants hoisted out of the recurrent loop (JAX does not CSE broadcasts)
    gate_scale = jnp.broadcast_to(w_ref[ROW_GSC:ROW_GSC + 1, :], (B, 128)).astype(f32)
    b1 = jnp.broadcast_to(w_ref[ROW_B1:ROW_B1 + 1, :], (B, 128)).astype(f32)

    def gates(z, c):
        # one full-width sigmoid; tanh(g) = 2*sigmoid(2g) - 1 (gate_scale doubles the g lanes)
        s = jax.nn.sigmoid(z * gate_scale)
        g = 2.0 * s[:, 64:96] - 1.0
        c_new = s[:, 32:64] * c + s[:, 0:32] * g                 # f*c + i*g
        return s[:, 96:128] * jnp.tanh(c_new), c_new             # o*tanh(c'), c'

    zeros32 = jnp.zeros((B, 32), f32)
    # s = 0: layer-0 step 0 only (recurrent term is zero)
    h1, c1 = gates(pre0[0:B], zeros32)
    h2, c2 = zeros32, zeros32

    # ---- skewed 2-layer LSTM: iteration s does layer-0 step s and layer-1 step s-1 ----------
    w_rec = wide_ref[WIDE_WREC:WIDE_WREC + 64, :]                # (64,256) = [Whh0|Wih1 ; 0|Whh1]
    for s in range(1, 9):                                        # static trip count -> unrolled
        fused = mm(jnp.concatenate([h1, h2], axis=1), w_rec)     # (B,256), uses h1[s-1], h2[s-2]
        if s < 8:
            h1_nxt, c1 = gates(fused[:, 0:128] + pre0[s * B:(s + 1) * B], c1)
        else:
            h1_nxt = h1
        h2, c2 = gates(fused[:, 128:256] + b1, c2)               # layer-1 step s-1
        h1 = h1_nxt
    hist_f = h2                                                  # == historical_output[:, -1, :]

    # ---- main MLP head (branch layer-2 pre-folded into the OFF_W1B block at pack time) ------
    z = (mm(jnp.concatenate([vec[:, 0:X_DIM], hist_f], axis=1),
            w_ref[OFF_W1XH:OFF_W1XH + 56, :])
         + mm(h_br, w_ref[OFF_W1B:OFF_W1B + BR_HID_PAD, :])
         + w_ref[ROW_NB1:ROW_NB1 + 1, :].astype(f32))
    h = jnp.maximum(z, 0.0)
    h = jnp.maximum(mm(h, w_ref[OFF_W2:OFF_W2 + 128, :])
                    + w_ref[ROW_NB2:ROW_NB2 + 1, :].astype(f32), 0.0)
    out = (mm(h[:, 0:64], w_ref[OFF_W3:OFF_W3 + 64, :])
           + w_ref[ROW_NB3:ROW_NB3 + 1, :].astype(f32))          # (B,128), lanes 0:3 real
    out_ref[...] = out


# ----------------------------------------------------------------------------
# host-side weight packing (done once; slabs are bf16 and reused across calls)
# ----------------------------------------------------------------------------
def pack_params(p):
    f32 = np.float32

    def g(name):
        return np.asarray(p[name], f32)

    def fuse_gates(x):                       # (4, in, 32) -> (in, 128), lanes = i|f|g|o
        x = np.asarray(x, f32)
        return np.transpose(x, (1, 0, 2)).reshape(x.shape[1], 128)

    wx0 = fuse_gates(p["wih0"])              # (8,128)
    wh0 = fuse_gates(p["whh0"])              # (32,128)
    wx1 = fuse_gates(p["wih1"])              # (32,128)
    wh1 = fuse_gates(p["whh1"])              # (32,128)
    b0 = fuse_gates(p["b0"])                 # (1,128)
    b1 = fuse_gates(p["b1"])                 # (1,128)

    # block-diagonal fusion of the six branch MLPs
    wb1 = np.zeros((BR_IN, BR_HID), f32)
    bb1 = np.zeros((1, BR_HID), f32)
    wb2 = np.zeros((BR_HID, BR_OUT), f32)
    bb2 = np.zeros((1, BR_OUT), f32)
    in_off = hid_off = out_off = 0
    for _name, din, dh, dout, kw1, kb1, kw2, kb2 in BRANCHES:
        wb1[in_off:in_off + din, hid_off:hid_off + dh] = g(kw1)
        bb1[0, hid_off:hid_off + dh] = g(kb1)
        wb2[hid_off:hid_off + dh, out_off:out_off + dout] = g(kw2)
        bb2[0, out_off:out_off + dout] = g(kb2)
        in_off += din; hid_off += dh; out_off += dout

    # main W1 (120,128): split rows into x / hist / branch-output blocks
    w1 = g("nw1")
    offs = np.cumsum((0,) + FEATURE_SPLITS)
    names = ("x", "sent", "hist", "cc", "mev", "gas", "liq", "tok")
    blk = {n: (int(a), int(b)) for n, a, b in zip(names, offs[:-1], offs[1:])}
    w1_x = w1[blk["x"][0]:blk["x"][1]]                               # (24,128)
    w1_hist = w1[blk["hist"][0]:blk["hist"][1]]                      # (32,128)
    w1_br = np.concatenate([w1[blk[n][0]:blk[n][1]]
                            for n in ("sent", "cc", "mev", "gas", "liq", "tok")], axis=0)  # (64,128)

    # fold branch layer-2 into W1 (Linear -> concat -> Linear is associative, dropout=identity)
    w1b_eff = wb2 @ w1_br                                            # (184,128)
    nb1_eff = g("nb1") + bb2 @ w1_br                                 # (1,128)

    # ---- main 128-lane slab ----
    slab = np.zeros((N_ROWS, 128), f32)
    slab[OFF_WX0:OFF_WX0 + 8] = wx0
    slab[ROW_B0] = b0
    slab[ROW_B1] = b1
    slab[ROW_NB1] = nb1_eff
    slab[ROW_NB2, 0:BR_OUT] = g("nb2")
    slab[ROW_NB3, 0:3] = g("nb3")
    gate_scale = np.ones(128, f32); gate_scale[64:96] = 2.0
    slab[ROW_GSC] = gate_scale
    slab[OFF_W1XH:OFF_W1XH + X_DIM] = w1_x
    slab[OFF_W1XH + X_DIM:OFF_W1XH + 56] = w1_hist
    slab[OFF_W2:OFF_W2 + 128, 0:BR_OUT] = g("nw2")
    slab[OFF_W3:OFF_W3 + 64, 0:3] = g("nw3")
    slab[OFF_W1B:OFF_W1B + BR_HID] = w1b_eff

    # ---- wide 256-lane slab ----
    wide = np.zeros((WIDE_ROWS, 256), f32)
    wide[WIDE_WB1:WIDE_WB1 + BR_IN, 0:BR_HID] = wb1
    wide[WIDE_BB1, 0:BR_HID] = bb1[0]
    wide[WIDE_WREC:WIDE_WREC + 32, 0:128] = wh0
    wide[WIDE_WREC:WIDE_WREC + 32, 128:256] = wx1
    wide[WIDE_WREC + 32:WIDE_WREC + 64, 128:256] = wh1

    return (jnp.asarray(slab).astype(jnp.bfloat16),
            jnp.asarray(wide).astype(jnp.bfloat16))


def pack_inputs(x, market, batch_block=8):
    """Host-side (numpy) packing of N requests into the kernel's lane/sublane-dense layout."""
    x = np.asarray(x, np.float32)
    n = x.shape[0]
    n_pad = -(-n // batch_block) * batch_block
    vec = np.zeros((n_pad, 128), np.float32)
    vec[:n, 0:X_DIM] = x
    off = X_DIM
    for name, din, *_ in BRANCHES:
        vec[:n, off:off + din] = np.asarray(market[name], np.float32).reshape(n, din)
        off += din
    hist = np.zeros((n_pad, 8, 8), np.float32)
    hist[:n] = np.asarray(market["historical"], np.float32).reshape(n, 8, 8)
    # per-chunk timestep-major layout: row = chunk*8B + t*B + b
    hist = hist.reshape(n_pad // batch_block, batch_block, 8, 8)
    hist = hist.transpose(0, 2, 1, 3).reshape(n_pad * 8, 8)
    return jnp.asarray(vec), jnp.asarray(hist), n


# ----------------------------------------------------------------------------
# jitted wrapper: grid over request chunks, weight slabs resident in VMEM
# ----------------------------------------------------------------------------
@functools.partial(jax.jit, static_argnames=("batch_block",))
def arbitrage_forward(vec_all, hist_all, w_slab, w_wide, batch_block=8):
    n = vec_all.shape[0]
    if n % batch_block != 0:
        raise ValueError("vec_all rows must be a multiple of batch_block (pad in pack_inputs)")
    nchunks = n // batch_block
    out = pl.pallas_call(
        _kernel,
        grid=(nchunks,),
        in_specs=[
            pl.BlockSpec((batch_block, 128), lambda i: (i, 0)),       # per-chunk inputs
            pl.BlockSpec((8 * batch_block, 8), lambda i: (i, 0)),     # per-chunk LSTM history
            pl.BlockSpec((N_ROWS, 128), lambda i: (0, 0)),            # weights: resident
            pl.BlockSpec((WIDE_ROWS, 256), lambda i: (0, 0)),         # weights: resident
        ],
        out_specs=pl.BlockSpec((batch_block, 128), lambda i: (i, 0)),
        out_shape=jax.ShapeDtypeStruct((n, 128), jnp.float32),
        compiler_params=pltpu.CompilerParams(dimension_semantics=("parallel",)),
    )(vec_all, hist_all, w_slab, w_wide)
    return out[:, 0:3]


# ----------------------------------------------------------------------------
# pure-JAX reference (unfused, follows the torch module structure) + param init
# ----------------------------------------------------------------------------
def _forward_reference(x, market, p):
    def mlp2(v, w1, b1, w2, b2):             # Linear -> ReLU -> Dropout(eval: id) -> Linear
        h = jnp.maximum(v @ w1 + b1, 0.0)
        return h @ w2 + b2

    feats = {}
    for name, _din, _dh, _dout, kw1, kb1, kw2, kb2 in BRANCHES:
        feats[name] = mlp2(market[name], p[kw1], p[kb1], p[kw2], p[kb2])

    def cell(xt, h, c, wih, whh, b):         # PyTorch LSTM cell, gate order (i, f, g, o)
        i = jax.nn.sigmoid(xt @ wih[0] + h @ whh[0] + b[0])
        f = jax.nn.sigmoid(xt @ wih[1] + h @ whh[1] + b[1])
        g = jnp.tanh(xt @ wih[2] + h @ whh[2] + b[2])
        o = jax.nn.sigmoid(xt @ wih[3] + h @ whh[3] + b[3])
        c = f * c + i * g
        return o * jnp.tanh(c), c

    hist = market["historical"]              # (N,8,8)
    n = hist.shape[0]
    h1 = c1 = h2 = c2 = jnp.zeros((n, 32), jnp.float32)
    for t in range(8):
        h1, c1 = cell(hist[:, t, :], h1, c1, p["wih0"], p["whh0"], p["b0"])
        h2, c2 = cell(h1, h2, c2, p["wih1"], p["whh1"], p["b1"])

    comb = jnp.concatenate(
        [x, feats["sentiment"], h2, feats["cross_chain"], feats["mev"],
         feats["gas"], feats["liquidity"], feats["token_economics"]], axis=1)   # (N,120)
    h = jnp.maximum(comb @ p["nw1"] + p["nb1"], 0.0)
    h = jnp.maximum(h @ p["nw2"] + p["nb2"], 0.0)
    return h @ p["nw3"] + p["nb3"]           # (N,3)


def _uniform(key, shape, bound):
    return jax.random.uniform(key, shape, jnp.float32, -bound, bound)


def init_params(seed=42):
    """Deterministic synthetic parameters (PyTorch-style +-1/sqrt(fan_in) uniform)."""
    keys = iter(jax.random.split(jax.random.PRNGKey(seed), 64))
    p = {}

    def linear(wname, bname, fan_in, fan_out):
        bound = 1.0 / math.sqrt(fan_in)
        p[wname] = _uniform(next(keys), (fan_in, fan_out), bound)   # stored as (in, out)
        p[bname] = _uniform(next(keys), (1, fan_out), bound)

    for _name, din, dh, dout, kw1, kb1, kw2, kb2 in BRANCHES:
        linear(kw1, kb1, din, dh)
        linear(kw2, kb2, dh, dout)

    bound = 1.0 / math.sqrt(32)
    p["wih0"] = _uniform(next(keys), (4, 8, 32), bound)
    p["whh0"] = _uniform(next(keys), (4, 32, 32), bound)
    p["b0"] = _uniform(next(keys), (4, 1, 32), bound) + _uniform(next(keys), (4, 1, 32), bound)
    p["wih1"] = _uniform(next(keys), (4, 32, 32), bound)
    p["whh1"] = _uniform(next(keys), (4, 32, 32), bound)
    p["b1"] = _uniform(next(keys), (4, 1, 32), bound) + _uniform(next(keys), (4, 1, 32), bound)

    bound = 1.0 / math.sqrt(120)
    p["nw1"] = _uniform(next(keys), (120, 128), bound)
    p["nb1"] = _uniform(next(keys), (1, 128), bound)
    bound = 1.0 / math.sqrt(128)
    p["nw2"] = _uniform(next(keys), (128, 64), bound)
    p["nb2"] = _uniform(next(keys), (1, 64), bound)
    bound = 1.0 / math.sqrt(64)
    p["nw3"] = _uniform(next(keys), (64, 3), bound)
    p["nb3"] = _uniform(next(keys), (1, 3), bound)
    return p


if __name__ == "__main__":
    N, B = 16, 8                                  # 16 requests, 8 per sublane-batched chunk
    key = jax.random.PRNGKey(0)
    kx, ks, kh, kc, km, kg, kl, kt = jax.random.split(key, 8)
    x = jax.random.normal(kx, (N, 24), jnp.float32)
    market = {
        "sentiment": jax.random.normal(ks, (N, 8), jnp.float32),
        "historical": jax.random.normal(kh, (N, 8, 8), jnp.float32),
        "cross_chain": jax.random.normal(kc, (N, 12), jnp.float32),
        "mev": jax.random.normal(km, (N, 8), jnp.float32),
        "gas": jax.random.normal(kg, (N, 6), jnp.float32),
        "liquidity": jax.random.normal(kl, (N, 10), jnp.float32),
        "token_economics": jax.random.normal(kt, (N, 12), jnp.float32),
    }

    params = init_params(seed=42)
    w_slab, w_wide = pack_params(params)          # packed once (bf16), reused across calls
    vec_all, hist_all, n_real = pack_inputs(np.asarray(x),
                                            {k: np.asarray(v) for k, v in market.items()},
                                            batch_block=B)

    out = jax.block_until_ready(
        arbitrage_forward(vec_all, hist_all, w_slab, w_wide, batch_block=B))[:n_real]
    ref = jax.block_until_ready(_forward_reference(x, market, params))
    assert out.shape == (N, 3), out.shape
    np.testing.assert_allclose(np.asarray(out), np.asarray(ref), rtol=1e-2, atol=1e-2)
    print("KERNEL_OK")
</pallas_src>

<mosaic_0001>
module attributes {stable_mosaic.version = 11 : i64} {
  func.func @_kernel(%arg0: i32, %arg1: memref<8x128xf32, #tpu.memory_space<vmem>>, %arg2: memref<64x8xf32, #tpu.memory_space<vmem>>, %arg3: memref<520x128xbf16, #tpu.memory_space<vmem>>, %arg4: memref<128x256xbf16, #tpu.memory_space<vmem>>, %arg5: memref<8x128xf32, #tpu.memory_space<vmem>>) attributes {dimension_semantics = [#tpu.dimension_semantics<parallel>], iteration_bounds = array<i64: 2>, scalar_prefetch = 0 : i64, scratch_operands = 0 : i64, tpu.core_type = #tpu.core_type<tc>, window_params = [{transform_indices = @transform_0, window_bounds = array<i64: 8, 128>}, {transform_indices = @transform_1, window_bounds = array<i64: 64, 8>}, {pipeline_mode = #tpu.pipeline_mode<synchronous>, transform_indices = @transform_2, window_bounds = array<i64: 520, 128>}, {pipeline_mode = #tpu.pipeline_mode<synchronous>, transform_indices = @transform_3, window_bounds = array<i64: 128, 256>}, {transform_indices = @transform_4, window_bounds = array<i64: 8, 128>}]} {
    %c0 = arith.constant 0 : index
    %c0_0 = arith.constant 0 : index
    %0 = vector.load %arg1[%c0, %c0_0] : memref<8x128xf32, #tpu.memory_space<vmem>>, vector<8x128xf32>
    %c0_1 = arith.constant 0 : index
    %c0_2 = arith.constant 0 : index
    %1 = vector.load %arg2[%c0_1, %c0_2] : memref<64x8xf32, #tpu.memory_space<vmem>>, vector<64x8xf32>
    %c56 = arith.constant 56 : index
    %c0_3 = arith.constant 0 : index
    %2 = vector.load %arg4[%c56, %c0_3] : memref<128x256xbf16, #tpu.memory_space<vmem>>, vector<1x256xbf16>
    %3 = arith.extf %2 : vector<1x256xbf16> to vector<1x256xf32>
    %4 = vector.extract_strided_slice %0 {offsets = [0, 24], sizes = [8, 56], strides = [1, 1]} : vector<8x128xf32> to vector<8x56xf32>
    %c0_4 = arith.constant 0 : index
    %c0_5 = arith.constant 0 : index
    %5 = vector.load %arg4[%c0_4, %c0_5] : memref<128x256xbf16, #tpu.memory_space<vmem>>, vector<56x256xbf16>
    %6 = arith.truncf %4 : vector<8x56xf32> to vector<8x56xbf16>
    %cst = arith.constant dense<0.000000e+00> : vector<8x256xf32>
    %7 = tpu.matmul %6, %5, %cst {dimension_numbers = #tpu.dot_dimension_numbers<[1], [0], [0], [1], [0, 0, 1, 1], [], []>} : vector<8x56xbf16>, vector<56x256xbf16>, vector<8x256xf32> -> vector<8x256xf32>
    %8 = vector.broadcast %3 : vector<1x256xf32> to vector<8x256xf32>
    %9 = arith.addf %7, %8 : vector<8x256xf32>
    %cst_6 = arith.constant 0.000000e+00 : f32
    %10 = vector.broadcast %cst_6 : f32 to vector<8x256xf32>
    %11 = arith.maximumf %9, %10 : vector<8x256xf32>
    %c8 = arith.constant 8 : index
    %c0_7 = arith.constant 0 : index
    %12 = vector.load %arg3[%c8, %c0_7] : memref<520x128xbf16, #tpu.memory_space<vmem>>, vector<1x128xbf16>
    %13 = arith.extf %12 : vector<1x128xbf16> to vector<1x128xf32>
    %c0_8 = arith.constant 0 : index
    %c0_9 = arith.constant 0 : index
    %14 = vector.load %arg3[%c0_8, %c0_9] : memref<520x128xbf16, #tpu.memory_space<vmem>>, vector<8x128xbf16>
    %15 = arith.truncf %1 : vector<64x8xf32> to vector<64x8xbf16>
    %cst_10 = arith.constant dense<0.000000e+00> : vector<64x128xf32>
    %16 = tpu.matmul %15, %14, %cst_10 {dimension_numbers = #tpu.dot_dimension_numbers<[1], [0], [0], [1], [0, 0, 1, 1], [], []>} : vector<64x8xbf16>, vector<8x128xbf16>, vector<64x128xf32> -> vector<64x128xf32>
    %17 = vector.broadcast %13 : vector<1x128xf32> to vector<64x128xf32>
    %18 = arith.addf %16, %17 : vector<64x128xf32>
    %c13 = arith.constant 13 : index
    %c0_11 = arith.constant 0 : index
    %19 = vector.load %arg3[%c13, %c0_11] : memref<520x128xbf16, #tpu.memory_space<vmem>>, vector<1x128xbf16>
    %20 = vector.shape_cast %19 : vector<1x128xbf16> to vector<1x128xbf16>
    %21 = vector.broadcast %20 : vector<1x128xbf16> to vector<8x128xbf16>
    %22 = arith.extf %21 : vector<8x128xbf16> to vector<8x128xf32>
    %c9 = arith.constant 9 : index
    %c0_12 = arith.constant 0 : index
    %23 = vector.load %arg3[%c9, %c0_12] : memref<520x128xbf16, #tpu.memory_space<vmem>>, vector<1x128xbf16>
    %24 = vector.shape_cast %23 : vector<1x128xbf16> to vector<1x128xbf16>
    %25 = vector.broadcast %24 : vector<1x128xbf16> to vector<8x128xbf16>
    %26 = arith.extf %25 : vector<8x128xbf16> to vector<8x128xf32>
    %cst_13 = arith.constant 0.000000e+00 : f32
    %27 = vector.broadcast %cst_13 : f32 to vector<8x32xf32>
    %28 = vector.extract_strided_slice %18 {offsets = [0, 0], sizes = [8, 128], strides = [1, 1]} : vector<64x128xf32> to vector<8x128xf32>
    %29 = arith.mulf %28, %22 : vector<8x128xf32>
    %30 = arith.negf %29 : vector<8x128xf32>
    %31 = math.exp %30 : vector<8x128xf32>
    %cst_14 = arith.constant 1.000000e+00 : f32
    %32 = vector.broadcast %cst_14 : f32 to vector<8x128xf32>
    %33 = arith.addf %32, %31 : vector<8x128xf32>
    %34 = arith.divf %32, %33 : vector<8x128xf32>
    %35 = vector.extract_strided_slice %34 {offsets = [0, 64], sizes = [8, 32], strides = [1, 1]} : vector<8x128xf32> to vector<8x32xf32>
    %cst_15 = arith.constant 2.000000e+00 : f32
    %36 = vector.broadcast %cst_15 : f32 to vector<8x32xf32>
    %37 = arith.mulf %36, %35 : vector<8x32xf32>
    %cst_16 = arith.constant 1.000000e+00 : f32
    %38 = vector.broadcast %cst_16 : f32 to vector<8x32xf32>
    %39 = arith.subf %37, %38 : vector<8x32xf32>
    %40 = vector.extract_strided_slice %34 {offsets = [0, 32], sizes = [8, 32], strides = [1, 1]} : vector<8x128xf32> to vector<8x32xf32>
    %41 = arith.mulf %40, %27 : vector<8x32xf32>
    %42 = vector.extract_strided_slice %34 {offsets = [0, 0], sizes = [8, 32], strides = [1, 1]} : vector<8x128xf32> to vector<8x32xf32>
    %43 = arith.mulf %42, %39 : vector<8x32xf32>
    %44 = arith.addf %41, %43 : vector<8x32xf32>
    %45 = vector.extract_strided_slice %34 {offsets = [0, 96], sizes = [8, 32], strides = [1, 1]} : vector<8x128xf32> to vector<8x32xf32>
    %46 = math.tanh %44 : vector<8x32xf32>
    %47 = arith.mulf %45, %46 : vector<8x32xf32>
    %c64 = arith.constant 64 : index
    %c0_17 = arith.constant 0 : index
    %48 = vector.load %arg4[%c64, %c0_17] : memref<128x256xbf16, #tpu.memory_space<vmem>>, vector<64x256xbf16>
    %49 = tpu.concatenate %47, %27 in 1 : vector<8x32xf32>, vector<8x32xf32> -> vector<8x64xf32>
    %50 = arith.truncf %49 : vector<8x64xf32> to vector<8x64xbf16>
    %cst_18 = arith.constant dense<0.000000e+00> : vector<8x256xf32>
    %51 = tpu.matmul %50, %48, %cst_18 {dimension_numbers = #tpu.dot_dimension_numbers<[1], [0], [0], [1], [0, 0, 1, 1], [], []>} : vector<8x64xbf16>, vector<64x256xbf16>, vector<8x256xf32> -> vector<8x256xf32>
    %52 = vector.extract_strided_slice %51 {offsets = [0, 0], sizes = [8, 128], strides = [1, 1]} : vector<8x256xf32> to vector<8x128xf32>
    %53 = vector.extract_strided_slice %18 {offsets = [8, 0], sizes = [8, 128], strides = [1, 1]} : vector<64x128xf32> to vector<8x128xf32>
    %54 = arith.addf %52, %53 : vector<8x128xf32>
    %55 = arith.mulf %54, %22 : vector<8x128xf32>
    %56 = arith.negf %55 : vector<8x128xf32>
    %57 = math.exp %56 : vector<8x128xf32>
    %cst_19 = arith.constant 1.000000e+00 : f32
    %58 = vector.broadcast %cst_19 : f32 to vector<8x128xf32>
    %59 = arith.addf %58, %57 : vector<8x128xf32>
    %60 = arith.divf %58, %59 : vector<8x128xf32>
    %61 = vector.extract_strided_slice %60 {offsets = [0, 64], sizes = [8, 32], strides = [1, 1]} : vector<8x128xf32> to vector<8x32xf32>
    %cst_20 = arith.constant 2.000000e+00 : f32
    %62 = vector.broadcast %cst_20 : f32 to vector<8x32xf32>
    %63 = arith.mulf %62, %61 : vector<8x32xf32>
    %cst_21 = arith.constant 1.000000e+00 : f32
    %64 = vector.broadcast %cst_21 : f32 to vector<8x32xf32>
    %65 = arith.subf %63, %64 : vector<8x32xf32>
    %66 = vector.extract_strided_slice %60 {offsets = [0, 32], sizes = [8, 32], strides = [1, 1]} : vector<8x128xf32> to vector<8x32xf32>
    %67 = arith.mulf %66, %44 : vector<8x32xf32>
    %68 = vector.extract_strided_slice %60 {offsets = [0, 0], sizes = [8, 32], strides = [1, 1]} : vector<8x128xf32> to vector<8x32xf32>
    %69 = arith.mulf %68, %65 : vector<8x32xf32>
    %70 = arith.addf %67, %69 : vector<8x32xf32>
    %71 = vector.extract_strided_slice %60 {offsets = [0, 96], sizes = [8, 32], strides = [1, 1]} : vector<8x128xf32> to vector<8x32xf32>
    %72 = math.tanh %70 : vector<8x32xf32>
    %73 = arith.mulf %71, %72 : vector<8x32xf32>
    %74 = vector.extract_strided_slice %51 {offsets = [0, 128], sizes = [8, 128], strides = [1, 1]} : vector<8x256xf32> to vector<8x128xf32>
    %75 = arith.addf %74, %26 : vector<8x128xf32>
    %76 = arith.mulf %75, %22 : vector<8x128xf32>
    %77 = arith.negf %76 : vector<8x128xf32>
    %78 = math.exp %77 : vector<8x128xf32>
    %cst_22 = arith.constant 1.000000e+00 : f32
    %79 = vector.broadcast %cst_22 : f32 to vector<8x128xf32>
    %80 = arith.addf %79, %78 : vector<8x128xf32>
    %81 = arith.divf %79, %80 : vector<8x128xf32>
    %82 = vector.extract_strided_slice %81 {offsets = [0, 64], sizes = [8, 32], strides = [1, 1]} : vector<8x128xf32> to vector<8x32xf32>
    %cst_23 = arith.constant 2.000000e+00 : f32
    %83 = vector.broadcast %cst_23 : f32 to vector<8x32xf32>
    %84 = arith.mulf %83, %82 : vector<8x32xf32>
    %cst_24 = arith.constant 1.000000e+00 : f32
    %85 = vector.broadcast %cst_24 : f32 to vector<8x32xf32>
    %86 = arith.subf %84, %85 : vector<8x32xf32>
    %87 = vector.extract_strided_slice %81 {offsets = [0, 32], sizes = [8, 32], strides = [1, 1]} : vector<8x128xf32> to vector<8x32xf32>
    %88 = arith.mulf %87, %27 : vector<8x32xf32>
    %89 = vector.extract_strided_slice %81 {offsets = [0, 0], sizes = [8, 32], strides = [1, 1]} : vector<8x128xf32> to vector<8x32xf32>
    %90 = arith.mulf %89, %86 : vector<8x32xf32>
    %91 = arith.addf %88, %90 : vector<8x32xf32>
    %92 = vector.extract_strided_slice %81 {offsets = [0, 96], sizes = [8, 32], strides = [1, 1]} : vector<8x128xf32> to vector<8x32xf32>
    %93 = math.tanh %91 : vector<8x32xf32>
    %94 = arith.mulf %92, %93 : vector<8x32xf32>
    %95 = tpu.concatenate %73, %94 in 1 : vector<8x32xf32>, vector<8x32xf32> -> vector<8x64xf32>
    %96 = arith.truncf %95 : vector<8x64xf32> to vector<8x64xbf16>
    %cst_25 = arith.constant dense<0.000000e+00> : vector<8x256xf32>
    %97 = tpu.matmul %96, %48, %cst_25 {dimension_numbers = #tpu.dot_dimension_numbers<[1], [0], [0], [1], [0, 0, 1, 1], [], []>} : vector<8x64xbf16>, vector<64x256xbf16>, vector<8x256xf32> -> vector<8x256xf32>
    %98 = vector.extract_strided_slice %97 {offsets = [0, 0], sizes = [8, 128], strides = [1, 1]} : vector<8x256xf32> to vector<8x128xf32>
    %99 = vector.extract_strided_slice %18 {offsets = [16, 0], sizes = [8, 128], strides = [1, 1]} : vector<64x128xf32> to vector<8x128xf32>
    %100 = arith.addf %98, %99 : vector<8x128xf32>
    %101 = arith.mulf %100, %22 : vector<8x128xf32>
    %102 = arith.negf %101 : vector<8x128xf32>
    %103 = math.exp %102 : vector<8x128xf32>
    %cst_26 = arith.constant 1.000000e+00 : f32
    %104 = vector.broadcast %cst_26 : f32 to vector<8x128xf32>
    %105 = arith.addf %104, %103 : vector<8x128xf32>
    %106 = arith.divf %104, %105 : vector<8x128xf32>
    %107 = vector.extract_strided_slice %106 {offsets = [0, 64], sizes = [8, 32], strides = [1, 1]} : vector<8x128xf32> to vector<8x32xf32>
    %cst_27 = arith.constant 2.000000e+00 : f32
    %108 = vector.broadcast %cst_27 : f32 to vector<8x32xf32>
    %109 = arith.mulf %108, %107 : vector<8x32xf32>
    %cst_28 = arith.constant 1.000000e+00 : f32
    %110 = vector.broadcast %cst_28 : f32 to vector<8x32xf32>
    %111 = arith.subf %109, %110 : vector<8x32xf32>
    %112 = vector.extract_strided_slice %106 {offsets = [0, 32], sizes = [8, 32], strides = [1, 1]} : vector<8x128xf32> to vector<8x32xf32>
    %113 = arith.mulf %112, %70 : vector<8x32xf32>
    %114 = vector.extract_strided_slice %106 {offsets = [0, 0], sizes = [8, 32], strides = [1, 1]} : vector<8x128xf32> to vector<8x32xf32>
    %115 = arith.mulf %114, %111 : vector<8x32xf32>
    %116 = arith.addf %113, %115 : vector<8x32xf32>
    %117 = vector.extract_strided_slice %106 {offsets = [0, 96], sizes = [8, 32], strides = [1, 1]} : vector<8x128xf32> to vector<8x32xf32>
    %118 = math.tanh %116 : vector<8x32xf32>
    %119 = arith.mulf %117, %118 : vector<8x32xf32>
    %120 = vector.extract_strided_slice %97 {offsets = [0, 128], sizes = [8, 128], strides = [1, 1]} : vector<8x256xf32> to vector<8x128xf32>
    %121 = arith.addf %120, %26 : vector<8x128xf32>
    %122 = arith.mulf %121, %22 : vector<8x128xf32>
    %123 = arith.negf %122 : vector<8x128xf32>
    %124 = math.exp %123 : vector<8x128xf32>
    %cst_29 = arith.constant 1.000000e+00 : f32
    %125 = vector.broadcast %cst_29 : f32 to vector<8x128xf32>
    %126 = arith.addf %125, %124 : vector<8x128xf32>
    %127 = arith.divf %125, %126 : vector<8x128xf32>
    %128 = vector.extract_strided_slice %127 {offsets = [0, 64], sizes = [8, 32], strides = [1, 1]} : vector<8x128xf32> to vector<8x32xf32>
    %cst_30 = arith.constant 2.000000e+00 : f32
    %129 = vector.broadcast %cst_30 : f32 to vector<8x32xf32>
    %130 = arith.mulf %129, %128 : vector<8x32xf32>
    %cst_31 = arith.constant 1.000000e+00 : f32
    %131 = vector.broadcast %cst_31 : f32 to vector<8x32xf32>
    %132 = arith.subf %130, %131 : vector<8x32xf32>
    %133 = vector.extract_strided_slice %127 {offsets = [0, 32], sizes = [8, 32], strides = [1, 1]} : vector<8x128xf32> to vector<8x32xf32>
    %134 = arith.mulf %133, %91 : vector<8x32xf32>
    %135 = vector.extract_strided_slice %127 {offsets = [0, 0], sizes = [8, 32], strides = [1, 1]} : vector<8x128xf32> to vector<8x32xf32>
    %136 = arith.mulf %135, %132 : vector<8x32xf32>
    %137 = arith.addf %134, %136 : vector<8x32xf32>
    %138 = vector.extract_strided_slice %127 {offsets = [0, 96], sizes = [8, 32], strides = [1, 1]} : vector<8x128xf32> to vector<8x32xf32>
    %139 = math.tanh %137 : vector<8x32xf32>
    %140 = arith.mulf %138, %139 : vector<8x32xf32>
    %141 = tpu.concatenate %119, %140 in 1 : vector<8x32xf32>, vector<8x32xf32> -> vector<8x64xf32>
    %142 = arith.truncf %141 : vector<8x64xf32> to vector<8x64xbf16>
    %cst_32 = arith.constant dense<0.000000e+00> : vector<8x256xf32>
    %143 = tpu.matmul %142, %48, %cst_32 {dimension_numbers = #tpu.dot_dimension_numbers<[1], [0], [0], [1], [0, 0, 1, 1], [], []>} : vector<8x64xbf16>, vector<64x256xbf16>, vector<8x256xf32> -> vector<8x256xf32>
    %144 = vector.extract_strided_slice %143 {offsets = [0, 0], sizes = [8, 128], strides = [1, 1]} : vector<8x256xf32> to vector<8x128xf32>
    %145 = vector.extract_strided_slice %18 {offsets = [24, 0], sizes = [8, 128], strides = [1, 1]} : vector<64x128xf32> to vector<8x128xf32>
    %146 = arith.addf %144, %145 : vector<8x128xf32>
    %147 = arith.mulf %146, %22 : vector<8x128xf32>
    %148 = arith.negf %147 : vector<8x128xf32>
    %149 = math.exp %148 : vector<8x128xf32>
    %cst_33 = arith.constant 1.000000e+00 : f32
    %150 = vector.broadcast %cst_33 : f32 to vector<8x128xf32>
    %151 = arith.addf %150, %149 : vector<8x128xf32>
    %152 = arith.divf %150, %151 : vector<8x128xf32>
    %153 = vector.extract_strided_slice %152 {offsets = [0, 64], sizes = [8, 32], strides = [1, 1]} : vector<8x128xf32> to vector<8x32xf32>
    %cst_34 = arith.constant 2.000000e+00 : f32
    %154 = vector.broadcast %cst_34 : f32 to vector<8x32xf32>
    %155 = arith.mulf %154, %153 : vector<8x32xf32>
    %cst_35 = arith.constant 1.000000e+00 : f32
    %156 = vector.broadcast %cst_35 : f32 to vector<8x32xf32>
    %157 = arith.subf %155, %156 : vector<8x32xf32>
    %158 = vector.extract_strided_slice %152 {offsets = [0, 32], sizes = [8, 32], strides = [1, 1]} : vector<8x128xf32> to vector<8x32xf32>
    %159 = arith.mulf %158, %116 : vector<8x32xf32>
    %160 = vector.extract_strided_slice %152 {offsets = [0, 0], sizes = [8, 32], strides = [1, 1]} : vector<8x128xf32> to vector<8x32xf32>
    %161 = arith.mulf %160, %157 : vector<8x32xf32>
    %162 = arith.addf %159, %161 : vector<8x32xf32>
    %163 = vector.extract_strided_slice %152 {offsets = [0, 96], sizes = [8, 32], strides = [1, 1]} : vector<8x128xf32> to vector<8x32xf32>
    %164 = math.tanh %162 : vector<8x32xf32>
    %165 = arith.mulf %163, %164 : vector<8x32xf32>
    %166 = vector.extract_strided_slice %143 {offsets = [0, 128], sizes = [8, 128], strides = [1, 1]} : vector<8x256xf32> to vector<8x128xf32>
    %167 = arith.addf %166, %26 : vector<8x128xf32>
    %168 = arith.mulf %167, %22 : vector<8x128xf32>
    %169 = arith.negf %168 : vector<8x128xf32>
    %170 = math.exp %169 : vector<8x128xf32>
    %cst_36 = arith.constant 1.000000e+00 : f32
    %171 = vector.broadcast %cst_36 : f32 to vector<8x128xf32>
    %172 = arith.addf %171, %170 : vector<8x128xf32>
    %173 = arith.divf %171, %172 : vector<8x128xf32>
    %174 = vector.extract_strided_slice %173 {offsets = [0, 64], sizes = [8, 32], strides = [1, 1]} : vector<8x128xf32> to vector<8x32xf32>
    %cst_37 = arith.constant 2.000000e+00 : f32
    %175 = vector.broadcast %cst_37 : f32 to vector<8x32xf32>
    %176 = arith.mulf %175, %174 : vector<8x32xf32>
    %cst_38 = arith.constant 1.000000e+00 : f32
    %177 = vector.broadcast %cst_38 : f32 to vector<8x32xf32>
    %178 = arith.subf %176, %177 : vector<8x32xf32>
    %179 = vector.extract_strided_slice %173 {offsets = [0, 32], sizes = [8, 32], strides = [1, 1]} : vector<8x128xf32> to vector<8x32xf32>
    %180 = arith.mulf %179, %137 : vector<8x32xf32>
    %181 = vector.extract_strided_slice %173 {offsets = [0, 0], sizes = [8, 32], strides = [1, 1]} : vector<8x128xf32> to vector<8x32xf32>
    %182 = arith.mulf %181, %178 : vector<8x32xf32>
    %183 = arith.addf %180, %182 : vector<8x32xf32>
    %184 = vector.extract_strided_slice %173 {offsets = [0, 96], sizes = [8, 32], strides = [1, 1]} : vector<8x128xf32> to vector<8x32xf32>
    %185 = math.tanh %183 : vector<8x32xf32>
    %186 = arith.mulf %184, %185 : vector<8x32xf32>
    %187 = tpu.concatenate %165, %186 in 1 : vector<8x32xf32>, vector<8x32xf32> -> vector<8x64xf32>
    %188 = arith.truncf %187 : vector<8x64xf32> to vector<8x64xbf16>
    %cst_39 = arith.constant dense<0.000000e+00> : vector<8x256xf32>
    %189 = tpu.matmul %188, %48, %cst_39 {dimension_numbers = #tpu.dot_dimension_numbers<[1], [0], [0], [1], [0, 0, 1, 1], [], []>} : vector<8x64xbf16>, vector<64x256xbf16>, vector<8x256xf32> -> vector<8x256xf32>
    %190 = vector.extract_strided_slice %189 {offsets = [0, 0], sizes = [8, 128], strides = [1, 1]} : vector<8x256xf32> to vector<8x128xf32>
    %191 = vector.extract_strided_slice %18 {offsets = [32, 0], sizes = [8, 128], strides = [1, 1]} : vector<64x128xf32> to vector<8x128xf32>
    %192 = arith.addf %190, %191 : vector<8x128xf32>
    %193 = arith.mulf %192, %22 : vector<8x128xf32>
    %194 = arith.negf %193 : vector<8x128xf32>
    %195 = math.exp %194 : vector<8x128xf32>
    %cst_40 = arith.constant 1.000000e+00 : f32
    %196 = vector.broadcast %cst_40 : f32 to vector<8x128xf32>
    %197 = arith.addf %196, %195 : vector<8x128xf32>
    %198 = arith.divf %196, %197 : vector<8x128xf32>
    %199 = vector.extract_strided_slice %198 {offsets = [0, 64], sizes = [8, 32], strides = [1, 1]} : vector<8x128xf32> to vector<8x32xf32>
    %cst_41 = arith.constant 2.000000e+00 : f32
    %200 = vector.broadcast %cst_41 : f32 to vector<8x32xf32>
    %201 = arith.mulf %200, %199 : vector<8x32xf32>
    %cst_42 = arith.constant 1.000000e+00 : f32
    %202 = vector.broadcast %cst_42 : f32 to vector<8x32xf32>
    %203 = arith.subf %201, %202 : vector<8x32xf32>
    %204 = vector.extract_strided_slice %198 {offsets = [0, 32], sizes = [8, 32], strides = [1, 1]} : vector<8x128xf32> to vector<8x32xf32>
    %205 = arith.mulf %204, %162 : vector<8x32xf32>
    %206 = vector.extract_strided_slice %198 {offsets = [0, 0], sizes = [8, 32], strides = [1, 1]} : vector<8x128xf32> to vector<8x32xf32>
    %207 = arith.mulf %206, %203 : vector<8x32xf32>
    %208 = arith.addf %205, %207 : vector<8x32xf32>
    %209 = vector.extract_strided_slice %198 {offsets = [0, 96], sizes = [8, 32], strides = [1, 1]} : vector<8x128xf32> to vector<8x32xf32>
    %210 = math.tanh %208 : vector<8x32xf32>
    %211 = arith.mulf %209, %210 : vector<8x32xf32>
    %212 = vector.extract_strided_slice %189 {offsets = [0, 128], sizes = [8, 128], strides = [1, 1]} : vector<8x256xf32> to vector<8x128xf32>
    %213 = arith.addf %212, %26 : vector<8x128xf32>
    %214 = arith.mulf %213, %22 : vector<8x128xf32>
    %215 = arith.negf %214 : vector<8x128xf32>
    %216 = math.exp %215 : vector<8x128xf32>
    %cst_43 = arith.constant 1.000000e+00 : f32
    %217 = vector.broadcast %cst_43 : f32 to vector<8x128xf32>
    %218 = arith.addf %217, %216 : vector<8x128xf32>
    %219 = arith.divf %217, %218 : vector<8x128xf32>
    %220 = vector.extract_strided_slice %219 {offsets = [0, 64], sizes = [8, 32], strides = [1, 1]} : vector<8x128xf32> to vector<8x32xf32>
    %cst_44 = arith.constant 2.000000e+00 : f32
    %221 = vector.broadcast %cst_44 : f32 to vector<8x32xf32>
    %222 = arith.mulf %221, %220 : vector<8x32xf32>
    %cst_45 = arith.constant 1.000000e+00 : f32
    %223 = vector.broadcast %cst_45 : f32 to vector<8x32xf32>
    %224 = arith.subf %222, %223 : vector<8x32xf32>
    %225 = vector.extract_strided_slice %219 {offsets = [0, 32], sizes = [8, 32], strides = [1, 1]} : vector<8x128xf32> to vector<8x32xf32>
    %226 = arith.mulf %225, %183 : vector<8x32xf32>
    %227 = vector.extract_strided_slice %219 {offsets = [0, 0], sizes = [8, 32], strides = [1, 1]} : vector<8x128xf32> to vector<8x32xf32>
    %228 = arith.mulf %227, %224 : vector<8x32xf32>
    %229 = arith.addf %226, %228 : vector<8x32xf32>
    %230 = vector.extract_strided_slice %219 {offsets = [0, 96], sizes = [8, 32], strides = [1, 1]} : vector<8x128xf32> to vector<8x32xf32>
    %231 = math.tanh %229 : vector<8x32xf32>
    %232 = arith.mulf %230, %231 : vector<8x32xf32>
    %233 = tpu.concatenate %211, %232 in 1 : vector<8x32xf32>, vector<8x32xf32> -> vector<8x64xf32>
    %234 = arith.truncf %233 : vector<8x64xf32> to vector<8x64xbf16>
    %cst_46 = arith.constant dense<0.000000e+00> : vector<8x256xf32>
    %235 = tpu.matmul %234, %48, %cst_46 {dimension_numbers = #tpu.dot_dimension_numbers<[1], [0], [0], [1], [0, 0, 1, 1], [], []>} : vector<8x64xbf16>, vector<64x256xbf16>, vector<8x256xf32> -> vector<8x256xf32>
    %236 = vector.extract_strided_slice %235 {offsets = [0, 0], sizes = [8, 128], strides = [1, 1]} : vector<8x256xf32> to vector<8x128xf32>
    %237 = vector.extract_strided_slice %18 {offsets = [40, 0], sizes = [8, 128], strides = [1, 1]} : vector<64x128xf32> to vector<8x128xf32>
    %238 = arith.addf %236, %237 : vector<8x128xf32>
    %239 = arith.mulf %238, %22 : vector<8x128xf32>
    %240 = arith.negf %239 : vector<8x128xf32>
    %241 = math.exp %240 : vector<8x128xf32>
    %cst_47 = arith.constant 1.000000e+00 : f32
    %242 = vector.broadcast %cst_47 : f32 to vector<8x128xf32>
    %243 = arith.addf %242, %241 : vector<8x128xf32>
    %244 = arith.divf %242, %243 : vector<8x128xf32>
    %245 = vector.extract_strided_slice %244 {offsets = [0, 64], sizes = [8, 32], strides = [1, 1]} : vector<8x128xf32> to vector<8x32xf32>
    %cst_48 = arith.constant 2.000000e+00 : f32
    %246 = vector.broadcast %cst_48 : f32 to vector<8x32xf32>
    %247 = arith.mulf %246, %245 : vector<8x32xf32>
    %cst_49 = arith.constant 1.000000e+00 : f32
    %248 = vector.broadcast %cst_49 : f32 to vector<8x32xf32>
    %249 = arith.subf %247, %248 : vector<8x32xf32>
    %250 = vector.extract_strided_slice %244 {offsets = [0, 32], sizes = [8, 32], strides = [1, 1]} : vector<8x128xf32> to vector<8x32xf32>
    %251 = arith.mulf %250, %208 : vector<8x32xf32>
    %252 = vector.extract_strided_slice %244 {offsets = [0, 0], sizes = [8, 32], strides = [1, 1]} : vector<8x128xf32> to vector<8x32xf32>
    %253 = arith.mulf %252, %249 : vector<8x32xf32>
    %254 = arith.addf %251, %253 : vector<8x32xf32>
    %255 = vector.extract_strided_slice %244 {offsets = [0, 96], sizes = [8, 32], strides = [1, 1]} : vector<8x128xf32> to vector<8x32xf32>
    %256 = math.tanh %254 : vector<8x32xf32>
    %257 = arith.mulf %255, %256 : vector<8x32xf32>
    %258 = vector.extract_strided_slice %235 {offsets = [0, 128], sizes = [8, 128], strides = [1, 1]} : vector<8x256xf32> to vector<8x128xf32>
    %259 = arith.addf %258, %26 : vector<8x128xf32>
    %260 = arith.mulf %259, %22 : vector<8x128xf32>
    %261 = arith.negf %260 : vector<8x128xf32>
    %262 = math.exp %261 : vector<8x128xf32>
    %cst_50 = arith.constant 1.000000e+00 : f32
    %263 = vector.broadcast %cst_50 : f32 to vector<8x128xf32>
    %264 = arith.addf %263, %262 : vector<8x128xf32>
    %265 = arith.divf %263, %264 : vector<8x128xf32>
    %266 = vector.extract_strided_slice %265 {offsets = [0, 64], sizes = [8, 32], strides = [1, 1]} : vector<8x128xf32> to vector<8x32xf32>
    %cst_51 = arith.constant 2.000000e+00 : f32
    %267 = vector.broadcast %cst_51 : f32 to vector<8x32xf32>
    %268 = arith.mulf %267, %266 : vector<8x32xf32>
    %cst_52 = arith.constant 1.000000e+00 : f32
    %269 = vector.broadcast %cst_52 : f32 to vector<8x32xf32>
    %270 = arith.subf %268, %269 : vector<8x32xf32>
    %271 = vector.extract_strided_slice %265 {offsets = [0, 32], sizes = [8, 32], strides = [1, 1]} : vector<8x128xf32> to vector<8x32xf32>
    %272 = arith.mulf %271, %229 : vector<8x32xf32>
    %273 = vector.extract_strided_slice %265 {offsets = [0, 0], sizes = [8, 32], strides = [1, 1]} : vector<8x128xf32> to vector<8x32xf32>
    %274 = arith.mulf %273, %270 : vector<8x32xf32>
    %275 = arith.addf %272, %274 : vector<8x32xf32>
    %276 = vector.extract_strided_slice %265 {offsets = [0, 96], sizes = [8, 32], strides = [1, 1]} : vector<8x128xf32> to vector<8x32xf32>
    %277 = math.tanh %275 : vector<8x32xf32>
    %278 = arith.mulf %276, %277 : vector<8x32xf32>
    %279 = tpu.concatenate %257, %278 in 1 : vector<8x32xf32>, vector<8x32xf32> -> vector<8x64xf32>
    %280 = arith.truncf %279 : vector<8x64xf32> to vector<8x64xbf16>
    %cst_53 = arith.constant dense<0.000000e+00> : vector<8x256xf32>
    %281 = tpu.matmul %280, %48, %cst_53 {dimension_numbers = #tpu.dot_dimension_numbers<[1], [0], [0], [1], [0, 0, 1, 1], [], []>} : vector<8x64xbf16>, vector<64x256xbf16>, vector<8x256xf32> -> vector<8x256xf32>
    %282 = vector.extract_strided_slice %281 {offsets = [0, 0], sizes = [8, 128], strides = [1, 1]} : vector<8x256xf32> to vector<8x128xf32>
    %283 = vector.extract_strided_slice %18 {offsets = [48, 0], sizes = [8, 128], strides = [1, 1]} : vector<64x128xf32> to vector<8x128xf32>
    %284 = arith.addf %282, %283 : vector<8x128xf32>
    %285 = arith.mulf %284, %22 : vector<8x128xf32>
    %286 = arith.negf %285 : vector<8x128xf32>
    %287 = math.exp %286 : vector<8x128xf32>
    %cst_54 = arith.constant 1.000000e+00 : f32
    %288 = vector.broadcast %cst_54 : f32 to vector<8x128xf32>
    %289 = arith.addf %288, %287 : vector<8x128xf32>
    %290 = arith.divf %288, %289 : vector<8x128xf32>
    %291 = vector.extract_strided_slice %290 {offsets = [0, 64], sizes = [8, 32], strides = [1, 1]} : vector<8x128xf32> to vector<8x32xf32>
    %cst_55 = arith.constant 2.000000e+00 : f32
    %292 = vector.broadcast %cst_55 : f32 to vector<8x32xf32>
    %293 = arith.mulf %292, %291 : vector<8x32xf32>
    %cst_56 = arith.constant 1.000000e+00 : f32
    %294 = vector.broadcast %cst_56 : f32 to vector<8x32xf32>
    %295 = arith.subf %293, %294 : vector<8x32xf32>
    %296 = vector.extract_strided_slice %290 {offsets = [0, 32], sizes = [8, 32], strides = [1, 1]} : vector<8x128xf32> to vector<8x32xf32>
    %297 = arith.mulf %296, %254 : vector<8x32xf32>
    %298 = vector.extract_strided_slice %290 {offsets = [0, 0], sizes = [8, 32], strides = [1, 1]} : vector<8x128xf32> to vector<8x32xf32>
    %299 = arith.mulf %298, %295 : vector<8x32xf32>
    %300 = arith.addf %297, %299 : vector<8x32xf32>
    %301 = vector.extract_strided_slice %290 {offsets = [0, 96], sizes = [8, 32], strides = [1, 1]} : vector<8x128xf32> to vector<8x32xf32>
    %302 = math.tanh %300 : vector<8x32xf32>
    %303 = arith.mulf %301, %302 : vector<8x32xf32>
    %304 = vector.extract_strided_slice %281 {offsets = [0, 128], sizes = [8, 128], strides = [1, 1]} : vector<8x256xf32> to vector<8x128xf32>
    %305 = arith.addf %304, %26 : vector<8x128xf32>
    %306 = arith.mulf %305, %22 : vector<8x128xf32>
    %307 = arith.negf %306 : vector<8x128xf32>
    %308 = math.exp %307 : vector<8x128xf32>
    %cst_57 = arith.constant 1.000000e+00 : f32
    %309 = vector.broadcast %cst_57 : f32 to vector<8x128xf32>
    %310 = arith.addf %309, %308 : vector<8x128xf32>
    %311 = arith.divf %309, %310 : vector<8x128xf32>
    %312 = vector.extract_strided_slice %311 {offsets = [0, 64], sizes = [8, 32], strides = [1, 1]} : vector<8x128xf32> to vector<8x32xf32>
    %cst_58 = arith.constant 2.000000e+00 : f32
    %313 = vector.broadcast %cst_58 : f32 to vector<8x32xf32>
    %314 = arith.mulf %313, %312 : vector<8x32xf32>
    %cst_59 = arith.constant 1.000000e+00 : f32
    %315 = vector.broadcast %cst_59 : f32 to vector<8x32xf32>
    %316 = arith.subf %314, %315 : vector<8x32xf32>
    %317 = vector.extract_strided_slice %311 {offsets = [0, 32], sizes = [8, 32], strides = [1, 1]} : vector<8x128xf32> to vector<8x32xf32>
    %318 = arith.mulf %317, %275 : vector<8x32xf32>
    %319 = vector.extract_strided_slice %311 {offsets = [0, 0], sizes = [8, 32], strides = [1, 1]} : vector<8x128xf32> to vector<8x32xf32>
    %320 = arith.mulf %319, %316 : vector<8x32xf32>
    %321 = arith.addf %318, %320 : vector<8x32xf32>
    %322 = vector.extract_strided_slice %311 {offsets = [0, 96], sizes = [8, 32], strides = [1, 1]} : vector<8x128xf32> to vector<8x32xf32>
    %323 = math.tanh %321 : vector<8x32xf32>
    %324 = arith.mulf %322, %323 : vector<8x32xf32>
    %325 = tpu.concatenate %303, %324 in 1 : vector<8x32xf32>, vector<8x32xf32> -> vector<8x64xf32>
    %326 = arith.truncf %325 : vector<8x64xf32> to vector<8x64xbf16>
    %cst_60 = arith.constant dense<0.000000e+00> : vector<8x256xf32>
    %327 = tpu.matmul %326, %48, %cst_60 {dimension_numbers = #tpu.dot_dimension_numbers<[1], [0], [0], [1], [0, 0, 1, 1], [], []>} : vector<8x64xbf16>, vector<64x256xbf16>, vector<8x256xf32> -> vector<8x256xf32>
    %328 = vector.extract_strided_slice %327 {offsets = [0, 0], sizes = [8, 128], strides = [1, 1]} : vector<8x256xf32> to vector<8x128xf32>
    %329 = vector.extract_strided_slice %18 {offsets = [56, 0], sizes = [8, 128], strides = [1, 1]} : vector<64x128xf32> to vector<8x128xf32>
    %330 = arith.addf %328, %329 : vector<8x128xf32>
    %331 = arith.mulf %330, %22 : vector<8x128xf32>
    %332 = arith.negf %331 : vector<8x128xf32>
    %333 = math.exp %332 : vector<8x128xf32>
    %cst_61 = arith.constant 1.000000e+00 : f32
    %334 = vector.broadcast %cst_61 : f32 to vector<8x128xf32>
    %335 = arith.addf %334, %333 : vector<8x128xf32>
    %336 = arith.divf %334, %335 : vector<8x128xf32>
    %337 = vector.extract_strided_slice %336 {offsets = [0, 64], sizes = [8, 32], strides = [1, 1]} : vector<8x128xf32> to vector<8x32xf32>
    %cst_62 = arith.constant 2.000000e+00 : f32
    %338 = vector.broadcast %cst_62 : f32 to vector<8x32xf32>
    %339 = arith.mulf %338, %337 : vector<8x32xf32>
    %cst_63 = arith.constant 1.000000e+00 : f32
    %340 = vector.broadcast %cst_63 : f32 to vector<8x32xf32>
    %341 = arith.subf %339, %340 : vector<8x32xf32>
    %342 = vector.extract_strided_slice %336 {offsets = [0, 32], sizes = [8, 32], strides = [1, 1]} : vector<8x128xf32> to vector<8x32xf32>
    %343 = arith.mulf %342, %300 : vector<8x32xf32>
    %344 = vector.extract_strided_slice %336 {offsets = [0, 0], sizes = [8, 32], strides = [1, 1]} : vector<8x128xf32> to vector<8x32xf32>
    %345 = arith.mulf %344, %341 : vector<8x32xf32>
    %346 = arith.addf %343, %345 : vector<8x32xf32>
    %347 = vector.extract_strided_slice %336 {offsets = [0, 96], sizes = [8, 32], strides = [1, 1]} : vector<8x128xf32> to vector<8x32xf32>
    %348 = math.tanh %346 : vector<8x32xf32>
    %349 = arith.mulf %347, %348 : vector<8x32xf32>
    %350 = vector.extract_strided_slice %327 {offsets = [0, 128], sizes = [8, 128], strides = [1, 1]} : vector<8x256xf32> to vector<8x128xf32>
    %351 = arith.addf %350, %26 : vector<8x128xf32>
    %352 = arith.mulf %351, %22 : vector<8x128xf32>
    %353 = arith.negf %352 : vector<8x128xf32>
    %354 = math.exp %353 : vector<8x128xf32>
    %cst_64 = arith.constant 1.000000e+00 : f32
    %355 = vector.broadcast %cst_64 : f32 to vector<8x128xf32>
    %356 = arith.addf %355, %354 : vector<8x128xf32>
    %357 = arith.divf %355, %356 : vector<8x128xf32>
    %358 = vector.extract_strided_slice %357 {offsets = [0, 64], sizes = [8, 32], strides = [1, 1]} : vector<8x128xf32> to vector<8x32xf32>
    %cst_65 = arith.constant 2.000000e+00 : f32
    %359 = vector.broadcast %cst_65 : f32 to vector<8x32xf32>
    %360 = arith.mulf %359, %358 : vector<8x32xf32>
    %cst_66 = arith.constant 1.000000e+00 : f32
    %361 = vector.broadcast %cst_66 : f32 to vector<8x32xf32>
    %362 = arith.subf %360, %361 : vector<8x32xf32>
    %363 = vector.extract_strided_slice %357 {offsets = [0, 32], sizes = [8, 32], strides = [1, 1]} : vector<8x128xf32> to vector<8x32xf32>
    %364 = arith.mulf %363, %321 : vector<8x32xf32>
    %365 = vector.extract_strided_slice %357 {offsets = [0, 0], sizes = [8, 32], strides = [1, 1]} : vector<8x128xf32> to vector<8x32xf32>
    %366 = arith.mulf %365, %362 : vector<8x32xf32>
    %367 = arith.addf %364, %366 : vector<8x32xf32>
    %368 = vector.extract_strided_slice %357 {offsets = [0, 96], sizes = [8, 32], strides = [1, 1]} : vector<8x128xf32> to vector<8x32xf32>
    %369 = math.tanh %367 : vector<8x32xf32>
    %370 = arith.mulf %368, %369 : vector<8x32xf32>
    %371 = tpu.concatenate %349, %370 in 1 : vector<8x32xf32>, vector<8x32xf32> -> vector<8x64xf32>
    %372 = arith.truncf %371 : vector<8x64xf32> to vector<8x64xbf16>
    %cst_67 = arith.constant dense<0.000000e+00> : vector<8x256xf32>
    %373 = tpu.matmul %372, %48, %cst_67 {dimension_numbers = #tpu.dot_dimension_numbers<[1], [0], [0], [1], [0, 0, 1, 1], [], []>} : vector<8x64xbf16>, vector<64x256xbf16>, vector<8x256xf32> -> vector<8x256xf32>
    %374 = vector.extract_strided_slice %373 {offsets = [0, 128], sizes = [8, 128], strides = [1, 1]} : vector<8x256xf32> to vector<8x128xf32>
    %375 = arith.addf %374, %26 : vector<8x128xf32>
    %376 = arith.mulf %375, %22 : vector<8x128xf32>
    %377 = arith.negf %376 : vector<8x128xf32>
    %378 = math.exp %377 : vector<8x128xf32>
    %cst_68 = arith.constant 1.000000e+00 : f32
    %379 = vector.broadcast %cst_68 : f32 to vector<8x128xf32>
    %380 = arith.addf %379, %378 : vector<8x128xf32>
    %381 = arith.divf %379, %380 : vector<8x128xf32>
    %382 = vector.extract_strided_slice %381 {offsets = [0, 64], sizes = [8, 32], strides = [1, 1]} : vector<8x128xf32> to vector<8x32xf32>
    %cst_69 = arith.constant 2.000000e+00 : f32
    %383 = vector.broadcast %cst_69 : f32 to vector<8x32xf32>
    %384 = arith.mulf %383, %382 : vector<8x32xf32>
    %cst_70 = arith.constant 1.000000e+00 : f32
    %385 = vector.broadcast %cst_70 : f32 to vector<8x32xf32>
    %386 = arith.subf %384, %385 : vector<8x32xf32>
    %387 = vector.extract_strided_slice %381 {offsets = [0, 32], sizes = [8, 32], strides = [1, 1]} : vector<8x128xf32> to vector<8x32xf32>
    %388 = arith.mulf %387, %367 : vector<8x32xf32>
    %389 = vector.extract_strided_slice %381 {offsets = [0, 0], sizes = [8, 32], strides = [1, 1]} : vector<8x128xf32> to vector<8x32xf32>
    %390 = arith.mulf %389, %386 : vector<8x32xf32>
    %391 = arith.addf %388, %390 : vector<8x32xf32>
    %392 = vector.extract_strided_slice %381 {offsets = [0, 96], sizes = [8, 32], strides = [1, 1]} : vector<8x128xf32> to vector<8x32xf32>
    %393 = math.tanh %391 : vector<8x32xf32>
    %394 = arith.mulf %392, %393 : vector<8x32xf32>
    %395 = vector.extract_strided_slice %0 {offsets = [0, 0], sizes = [8, 24], strides = [1, 1]} : vector<8x128xf32> to vector<8x24xf32>
    %396 = tpu.concatenate %395, %394 in 1 : vector<8x24xf32>, vector<8x32xf32> -> vector<8x56xf32>
    %c16 = arith.constant 16 : index
    %c0_71 = arith.constant 0 : index
    %397 = vector.load %arg3[%c16, %c0_71] : memref<520x128xbf16, #tpu.memory_space<vmem>>, vector<56x128xbf16>
    %398 = arith.truncf %396 : vector<8x56xf32> to vector<8x56xbf16>
    %cst_72 = arith.constant dense<0.000000e+00> : vector<8x128xf32>
    %399 = tpu.matmul %398, %397, %cst_72 {dimension_numbers = #tpu.dot_dimension_numbers<[1], [0], [0], [1], [0, 0, 1, 1], [], []>} : vector<8x56xbf16>, vector<56x128xbf16>, vector<8x128xf32> -> vector<8x128xf32>
    %c264 = arith.constant 264 : index
    %c0_73 = arith.constant 0 : index
    %400 = vector.load %arg3[%c264, %c0_73] : memref<520x128xbf16, #tpu.memory_space<vmem>>, vector<256x128xbf16>
    %401 = arith.truncf %11 : vector<8x256xf32> to vector<8x256xbf16>
    %cst_74 = arith.constant dense<0.000000e+00> : vector<8x128xf32>
    %402 = tpu.matmul %401, %400, %cst_74 {dimension_numbers = #tpu.dot_dimension_numbers<[1], [0], [0], [1], [0, 0, 1, 1], [], []>} : vector<8x256xbf16>, vector<256x128xbf16>, vector<8x128xf32> -> vector<8x128xf32>
    %403 = arith.addf %399, %402 : vector<8x128xf32>
    %c10 = arith.constant 10 : index
    %c0_75 = arith.constant 0 : index
    %404 = vector.load %arg3[%c10, %c0_75] : memref<520x128xbf16, #tpu.memory_space<vmem>>, vector<1x128xbf16>
    %405 = arith.extf %404 : vector<1x128xbf16> to vector<1x128xf32>
    %406 = vector.broadcast %405 : vector<1x128xf32> to vector<8x128xf32>
    %407 = arith.addf %403, %406 : vector<8x128xf32>
    %cst_76 = arith.constant 0.000000e+00 : f32
    %408 = vector.broadcast %cst_76 : f32 to vector<8x128xf32>
    %409 = arith.maximumf %407, %408 : vector<8x128xf32>
    %c72 = arith.constant 72 : index
    %c0_77 = arith.constant 0 : index
    %410 = vector.load %arg3[%c72, %c0_77] : memref<520x128xbf16, #tpu.memory_space<vmem>>, vector<128x128xbf16>
    %411 = arith.truncf %409 : vector<8x128xf32> to vector<8x128xbf16>
    %cst_78 = arith.constant dense<0.000000e+00> : vector<8x128xf32>
    %412 = tpu.matmul %411, %410, %cst_78 {dimension_numbers = #tpu.dot_dimension_numbers<[1], [0], [0], [1], [0, 0, 1, 1], [], []>} : vector<8x128xbf16>, vector<128x128xbf16>, vector<8x128xf32> -> vector<8x128xf32>
    %c11 = arith.constant 11 : index
    %c0_79 = arith.constant 0 : index
    %413 = vector.load %arg3[%c11, %c0_79] : memref<520x128xbf16, #tpu.memory_space<vmem>>, vector<1x128xbf16>
    %414 = arith.extf %413 : vector<1x128xbf16> to vector<1x128xf32>
    %415 = vector.broadcast %414 : vector<1x128xf32> to vector<8x128xf32>
    %416 = arith.addf %412, %415 : vector<8x128xf32>
    %cst_80 = arith.constant 0.000000e+00 : f32
    %417 = vector.broadcast %cst_80 : f32 to vector<8x128xf32>
    %418 = arith.maximumf %416, %417 : vector<8x128xf32>
    %419 = vector.extract_strided_slice %418 {offsets = [0, 0], sizes = [8, 64], strides = [1, 1]} : vector<8x128xf32> to vector<8x64xf32>
    %c200 = arith.constant 200 : index
    %c0_81 = arith.constant 0 : index
    %420 = vector.load %arg3[%c200, %c0_81] : memref<520x128xbf16, #tpu.memory_space<vmem>>, vector<64x128xbf16>
    %421 = arith.truncf %419 : vector<8x64xf32> to vector<8x64xbf16>
    %cst_82 = arith.constant dense<0.000000e+00> : vector<8x128xf32>
    %422 = tpu.matmul %421, %420, %cst_82 {dimension_numbers = #tpu.dot_dimension_numbers<[1], [0], [0], [1], [0, 0, 1, 1], [], []>} : vector<8x64xbf16>, vector<64x128xbf16>, vector<8x128xf32> -> vector<8x128xf32>
    %c12 = arith.constant 12 : index
    %c0_83 = arith.constant 0 : index
    %423 = vector.load %arg3[%c12, %c0_83] : memref<520x128xbf16, #tpu.memory_space<vmem>>, vector<1x128xbf16>
    %424 = arith.extf %423 : vector<1x128xbf16> to vector<1x128xf32>
    %425 = vector.broadcast %424 : vector<1x128xf32> to vector<8x128xf32>
    %426 = arith.addf %422, %425 : vector<8x128xf32>
    %c0_84 = arith.constant 0 : index
    %c0_85 = arith.constant 0 : index
    %427 = vector.load %arg5[%c0_84, %c0_85] : memref<8x128xf32, #tpu.memory_space<vmem>>, vector<8x128xf32>
    tpu.vector_store %arg5[%c0_84, %c0_85], %426 {strides = array<i32>} : memref<8x128xf32, #tpu.memory_space<vmem>>, vector<8x128xf32>,
    return
  }
  func.func @transform_0(%arg0: i32) -> (i32, i32) {
    %c0_i32 = arith.constant 0 : i32
    %c0_i32_0 = arith.constant 0 : i32
    return %arg0, %c0_i32 : i32, i32
  }
  func.func @transform_1(%arg0: i32) -> (i32, i32) {
    %c0_i32 = arith.constant 0 : i32
    %c0_i32_0 = arith.constant 0 : i32
    return %arg0, %c0_i32 : i32, i32
  }
  func.func @transform_2(%arg0: i32) -> (i32, i32) {
    %c0_i32 = arith.constant 0 : i32
    %c0_i32_0 = arith.constant 0 : i32
    %c0_i32_1 = arith.constant 0 : i32
    return %c0_i32, %c0_i32_0 : i32, i32
  }
  func.func @transform_3(%arg0: i32) -> (i32, i32) {
    %c0_i32 = arith.constant 0 : i32
    %c0_i32_0 = arith.constant 0 : i32
    %c0_i32_1 = arith.constant 0 : i32
    return %c0_i32, %c0_i32_0 : i32, i32
  }
  func.func @transform_4(%arg0: i32) -> (i32, i32) {
    %c0_i32 = arith.constant 0 : i32
    %c0_i32_0 = arith.constant 0 : i32
    return %arg0, %c0_i32 : i32, i32
  }
}

</mosaic_0001>

<llo_original>
// kernel: arbitrage_forward.1
$region0: #{arbitrage_forward.1}
  #allocation0 [shape = 'u32[]', space=smem, size = 0x4, offset = 0x4, fixed_abs, tag = 'smem constant byte address 0x4 - core index']
  #allocation1 [shape = 'u32[144,128]{1,0:T(1,128)}', space=vmem, size = 0x12000, scoped, tag = 'internal scratch']
  %s0 = inlined_call_operand.vmem [shape: f32[16,128], index: 0, kind: input, shape index: {}]
  %s1 = inlined_call_operand.vmem [shape: f32[128,8], index: 1, kind: input, shape index: {}]
  %s2 = inlined_call_operand.hbm [shape: bf16[520,128], index: 2, kind: input, shape index: {}]
  %s3 = inlined_call_operand.vmem [shape: bf16[128,256], index: 3, kind: input, shape index: {}]
  %s4 = inlined_call_operand.vmem [shape: f32[16,128], index: 4, kind: output, shape index: {}]
  %s5 = sld [smem:[#allocation0]]
  $region53: #{arbitrage_forward.1} parent=0
    _
  %s7 = ssub.s32 1, %s5
  %s8 = scalar_select 0, %s7, %s5
  $region1: #{arbitrage_forward.1} parent=0
    #allocation2 [shape = 'u8[133120]{0}', space=vmem, size = 0x20800, scoped, tag = 'input window, operand 2, single buffered']
    #allocation3 [shape = 's32[2]{0}', space=sflag, size = 0x8, scoped, tag = 'scoped memory for arbitrage_forward.1']
    %9 = vsyncpa [#allocation3], 0
    loop: start=0, step=1, limit=4
    $region2: #{arbitrage_forward.1} parent=1 // loop_pre_header
      _
    $region3: #{arbitrage_forward.1} parent=1 // loop_header
      %s11 = sphi 0, %s15
      %p12 = scmp.ge.s32.totalorder %s11, 4
      %s21 = sphi 0, %s23
      %s24 = sphi 0, %s21
      %s25 = sphi 0, %s24
      %s41 = sphi 0, %s25
      %s47 = sphi 0, %s49
      %s50 = sphi 0, %s47
      %s51 = sphi 0, %s50
      %s67 = sphi 0, %s51
      %s71 = sphi 0, %s71
      %s73 = sphi 0, %s71
      %s74 = sphi 0, %s73
      %s88 = sphi 0, %s74
      %s92 = sphi 0, %s92
      %s94 = sphi 0, %s92
      %s95 = sphi 0, %s94
      %s109 = sphi 0, %s95
      %s115 = sphi 0, %s117
      %s118 = sphi 0, %s115
      %s119 = sphi 0, %s118
      %s135 = sphi 0, %s119
    $region4: #{arbitrage_forward.1} parent=1 // loop_header_branch
      %14 = sbr.rel (%p12) target = $region8
    $region5: #{arbitrage_forward.1} parent=1 // loop_body
      %s16 = ssub.s32 %s11, 1
      %s17 = ssub.s32 %s11, 2
      %s18 = sadd.s32 %s11, 1
      %s19 = ssub.s32 %s11, %s18
      %p20 = scmp.eq.s32.totalorder %s19, 0
      %s22 = sadd.s32 %s21, 1
      %s23 = scalar_select %p20, %s21, %s22
      %p26 = pneg %p20
      %p27 = scmp.eq.s32.totalorder %s11, 1
      %p28 = por %p26, %p27
      %p29 = scmp.ne.s32.totalorder %s21, %s24
      %p30 = scmp.eq.s32.totalorder %s11, 0
      %p31 = por %p29, %p30
      %p32 = scmp.ne.s32.totalorder %s21, %s24
      %p33 = scmp.eq.s32.totalorder %s16, 1
      %p34 = por %p32, %p33
      %p35 = scmp.ne.s32.totalorder %s24, %s25
      %p36 = scmp.eq.s32.totalorder %s16, 0
      %p37 = por %p35, %p36
      %p38 = scmp.ne.s32.totalorder %s24, %s25
      %p39 = scmp.eq.s32.totalorder %s17, 1
      %p40 = por %p38, %p39
      %p42 = scmp.ne.s32.totalorder %s25, %s41
      %p43 = scmp.eq.s32.totalorder %s17, 0
      %p44 = por %p42, %p43
      %s45 = ssub.s32 %s11, %s18
      %p46 = scmp.eq.s32.totalorder %s45, 0
      %s48 = sadd.s32 %s47, 1
      %s49 = scalar_select %p46, %s47, %s48
      %p52 = pneg %p46
      %p53 = scmp.eq.s32.totalorder %s11, 1
      %p54 = por %p52, %p53
      %p55 = scmp.ne.s32.totalorder %s47, %s50
      %p56 = scmp.eq.s32.totalorder %s11, 0
      %p57 = por %p55, %p56
      %p58 = scmp.ne.s32.totalorder %s47, %s50
      %p59 = scmp.eq.s32.totalorder %s16, 1
      %p60 = por %p58, %p59
      %p61 = scmp.ne.s32.totalorder %s50, %s51
      %p62 = scmp.eq.s32.totalorder %s16, 0
      %p63 = por %p61, %p62
      %p64 = scmp.ne.s32.totalorder %s50, %s51
      %p65 = scmp.eq.s32.totalorder %s17, 1
      %p66 = por %p64, %p65
      %p68 = scmp.ne.s32.totalorder %s51, %s67
      %p69 = scmp.eq.s32.totalorder %s17, 0
      %p70 = por %p68, %p69
      %s72 = sadd.s32 %s71, 1
      %p75 = scmp.eq.s32.totalorder %s11, 1
      %p76 = scmp.ne.s32.totalorder %s71, %s73
      %p77 = scmp.eq.s32.totalorder %s11, 0
      %p78 = por %p76, %p77
      %p79 = scmp.ne.s32.totalorder %s71, %s73
      %p80 = scmp.eq.s32.totalorder %s16, 1
      %p81 = por %p79, %p80
      %p82 = scmp.ne.s32.totalorder %s73, %s74
      %p83 = scmp.eq.s32.totalorder %s16, 0
      %p84 = por %p82, %p83
      %p85 = scmp.ne.s32.totalorder %s73, %s74
      %p86 = scmp.eq.s32.totalorder %s17, 1
      %p87 = por %p85, %p86
      %p89 = scmp.ne.s32.totalorder %s74, %s88
      %p90 = scmp.eq.s32.totalorder %s17, 0
      %p91 = por %p89, %p90
      %s93 = sadd.s32 %s92, 1
      %p96 = scmp.eq.s32.totalorder %s11, 1
      %p97 = scmp.ne.s32.totalorder %s92, %s94
      %p98 = scmp.eq.s32.totalorder %s11, 0
      %p99 = por %p97, %p98
      %p100 = scmp.ne.s32.totalorder %s92, %s94
      %p101 = scmp.eq.s32.totalorder %s16, 1
      %p102 = por %p100, %p101
      %p103 = scmp.ne.s32.totalorder %s94, %s95
      %p104 = scmp.eq.s32.totalorder %s16, 0
      %p105 = por %p103, %p104
      %p106 = scmp.ne.s32.totalorder %s94, %s95
      %p107 = scmp.eq.s32.totalorder %s17, 1
      %p108 = por %p106, %p107
      %p110 = scmp.ne.s32.totalorder %s95, %s109
      %p111 = scmp.eq.s32.totalorder %s17, 0
      %p112 = por %p110, %p111
      %s113 = ssub.s32 %s11, %s18
      %p114 = scmp.eq.s32.totalorder %s113, 0
      %s116 = sadd.s32 %s115, 1
      %s117 = scalar_select %p114, %s115, %s116
      %p120 = pneg %p114
      %p121 = scmp.eq.s32.totalorder %s11, 1
      %p122 = por %p120, %p121
      %p123 = scmp.ne.s32.totalorder %s115, %s118
      %p124 = scmp.eq.s32.totalorder %s11, 0
      %p125 = por %p123, %p124
      %p126 = scmp.ne.s32.totalorder %s115, %s118
      %p127 = scmp.eq.s32.totalorder %s16, 1
      %p128 = por %p126, %p127
      %p129 = scmp.ne.s32.totalorder %s118, %s119
      %p130 = scmp.eq.s32.totalorder %s16, 0
      %p131 = por %p129, %p130
      %p132 = scmp.ne.s32.totalorder %s118, %s119
      %p133 = scmp.eq.s32.totalorder %s17, 1
      %p134 = por %p132, %p133
      %p136 = scmp.ne.s32.totalorder %s119, %s135
      %p137 = scmp.eq.s32.totalorder %s17, 0
      %p138 = por %p136, %p137
      %p139 = scmp.le.s32.totalorder 1, %s11
      %p140 = scmp.lt.s32.totalorder %s11, 3
      %p141 = pnand %p139, %p140
      %p142 = pneg %p141
      // Predicated region
      $region9: #{arbitrage_forward.1} parent=5 // pred_check
        _
      $region10: #{arbitrage_forward.1} parent=5 // pred_check_branch
        %144 = sbr.rel (%p141) target = $region12
      $region11: #{arbitrage_forward.1} parent=5 // pred_region
        %s145 = ssub.s32 %s11, 1
        // Predicated region
        $region13: #{arbitrage_forward.1} parent=11 // pred_check
          %p146 = pneg %p84
        $region14: #{arbitrage_forward.1} parent=11 // pred_check_branch
          %148 = sbr.rel (%p146) target = $region16
        $region15: #{arbitrage_forward.1} parent=11 // pred_region
          %s150 = ssub.s32 4160, 4160
          %151 = vsyncadd [#allocation3], %s150
          %s152 = sshll.u32 [#allocation2], 4
          %s153 = int_to_ptr.vmem [resolvable:$true] %s152
          %158 = dma.hbm_to_vmem [thread:$0]  %s2, 4160, %s153, [#allocation3], 64, 64, 4
        $region16: #{arbitrage_forward.1} parent=11 // pred_fallthru
          _
        // Predicated region
        $region17: #{arbitrage_forward.1} parent=11 // pred_check
          %p159 = pneg %p105
        $region18: #{arbitrage_forward.1} parent=11 // pred_check_branch
          %161 = sbr.rel (%p159) target = $region20
        $region19: #{arbitrage_forward.1} parent=11 // pred_region
          _
        $region20: #{arbitrage_forward.1} parent=11 // pred_fallthru
          _
      $region12: #{arbitrage_forward.1} parent=5 // pred_fallthru
        _
      %p162 = scmp.lt.s32.totalorder %s11, 2
      // Predicated region
      $region21: #{arbitrage_forward.1} parent=5 // pred_check
        %p163 = pneg %p162
      $region22: #{arbitrage_forward.1} parent=5 // pred_check_branch
        %165 = sbr.rel (%p163) target = $region24
      $region23: #{arbitrage_forward.1} parent=5 // pred_region
        // Predicated region
        $region25: #{arbitrage_forward.1} parent=23 // pred_check
          %p166 = pneg %p31
        $region26: #{arbitrage_forward.1} parent=23 // pred_check_branch
          %168 = sbr.rel (%p166) target = $region28
        $region27: #{arbitrage_forward.1} parent=23 // pred_region
          %p169 = scmp.lt.s32.totalorder %s11, 1
          %s170 = scalar_select %p169, %s11, 1
          %s171 = smul.addr %s170, 8
          %s172 = scalar_lea.vmem %s0, %s171
        $region28: #{arbitrage_forward.1} parent=23 // pred_fallthru
          _
        // Predicated region
        $region29: #{arbitrage_forward.1} parent=23 // pred_check
          %p173 = pneg %p57
        $region30: #{arbitrage_forward.1} parent=23 // pred_check_branch
          %175 = sbr.rel (%p173) target = $region32
        $region31: #{arbitrage_forward.1} parent=23 // pred_region
          %s176 = smul.u32 8, %s11
          %p177 = scmp.lt.s32.totalorder %s176, 15
          %s178 = scalar_select %p177, %s176, 15
          %s179 = smul.addr %s178, 8
          %s180 = scalar_lea.vmem %s1, %s179
          %s181 = smul.u32 8, %s11
        $region32: #{arbitrage_forward.1} parent=23 // pred_fallthru
          _
      $region24: #{arbitrage_forward.1} parent=5 // pred_fallthru
        _
      %p182 = scmp.le.s32.totalorder 1, %s11
      %p183 = scmp.lt.s32.totalorder %s11, 3
      %p184 = pnand %p182, %p183
      %p185 = pneg %p184
      // Predicated region
      $region33: #{arbitrage_forward.1} parent=5 // pred_check
        _
      $region34: #{arbitrage_forward.1} parent=5 // pred_check_branch
        %187 = sbr.rel (%p184) target = $region36
      $region35: #{arbitrage_forward.1} parent=5 // pred_region
        %s188 = ssub.s32 %s11, 1
        // Predicated region
        $region37: #{arbitrage_forward.1} parent=35 // pred_check
          %p189 = pneg %p84
        $region38: #{arbitrage_forward.1} parent=35 // pred_check_branch
          %191 = sbr.rel (%p189) target = $region40
        $region39: #{arbitrage_forward.1} parent=35 // pred_region
          %192 = dma.done [#allocation3], 4160
        $region40: #{arbitrage_forward.1} parent=35 // pred_fallthru
          _
        %p193 = scmp.lt.s32.totalorder %s16, 1
        %s194 = scalar_select %p193, %s16, 1
        %s195 = smul.addr %s194, 8
        %s196 = scalar_lea.vmem %s0, %s195
        %p197 = pneg %p37
        %p198 = pneg %p34
        %s199 = smul.u32 8, %s16
        %p200 = scmp.lt.s32.totalorder %s199, 15
        %s201 = scalar_select %p200, %s199, 15
        %s202 = smul.addr %s201, 8
        %s203 = scalar_lea.vmem %s1, %s202
        %p204 = pneg %p63
        %p205 = pneg %p60
        %p206 = pneg %p84
        %p207 = pneg %p81
        %p208 = pneg %p105
        %p209 = pneg %p102
        %p210 = pneg %p131
        %p211 = pneg %p128
        %p212 = scmp.lt.s32.totalorder %s16, 1
        %s213 = scalar_select %p212, %s16, 1
        %s214 = smul.addr %s213, 8
        %s215 = scalar_lea.vmem %s4, %s214
        %p216 = scmp.lt.s32.totalorder %s16, 1
        %s217 = scalar_select %p216, %s16, 1
        %s218 = smul.addr %s217, 8
        %s219 = scalar_lea.vmem %s0, %s218
        %s220 = smul.u32 8, %s16
        %p221 = scmp.lt.s32.totalorder %s220, 15
        %s222 = scalar_select %p221, %s220, 15
        %s223 = smul.addr %s222, 8
        %s224 = scalar_lea.vmem %s1, %s223
        %s225 = smul.u32 8, %s16
        %p226 = scmp.lt.s32.totalorder %s16, 1
        %s227 = scalar_select %p226, %s16, 1
        %s228 = smul.addr %s227, 8
        %s229 = scalar_lea.vmem %s4, %s228
        %v231 = vld [vmem:[%s219] sm:$0xff]
        %v232 = vld [vmem:[%s224] sm:$0xff]
        %v233 = vld [vmem:[%s224 + $0x8] sm:$0xff]
        %v234 = vld [vmem:[%s224 + $0x10] sm:$0xff]
        %v235 = vld [vmem:[%s224 + $0x18] sm:$0xff]
        %v236 = vld [vmem:[%s224 + $0x20] sm:$0xff]
        %v237 = vld [vmem:[%s224 + $0x28] sm:$0xff]
        %v238 = vld [vmem:[%s224 + $0x30] sm:$0xff]
        %v239 = vld [vmem:[%s224 + $0x38] sm:$0xff]
        %v240 = vld [vmem:[%s3 + $0x38] sm:$0x11]
        %v241 = vunpack.c.l.bf16 %v240
        %v242 = vunpack.c.h.bf16 %v240
        %v243 = vld [vmem:[%s3] sm:$0xff]
        %v244 = vld [vmem:[%s3 + $0x8] sm:$0xff]
        %v245 = vld [vmem:[%s3 + $0x10] sm:$0xff]
        %v246 = vld [vmem:[%s3 + $0x18] sm:$0xff]
        %v247 = vld [vmem:[%s3 + $0x20] sm:$0xff]
        %v248 = vld [vmem:[%s3 + $0x28] sm:$0xff]
        %v249 = vld [vmem:[%s3 + $0x30] sm:$0xff]
        %v250 = vpack.c.bf16 %v231, %v231
        %v251 = vlaneseq
        %v252 = vshrl.u32 %v251, 7
        %v253 = vsub.s32 0, %v252
        %v254 = vrot.slane %v241, %v253
        %v255 = vlaneseq
        %v256 = vshrl.u32 %v255, 7
        %v257 = vsub.s32 0, %v256
        %v258 = vrot.slane %v242, %v257
        %260 = vrot.lane.b32.xlu0 %v250, 104
        %v261 = vpop.permute.xlu0 %260
        %v269 = vunpack.c.l.b16 %v243
        %v270 = vunpack.c.h.b16 %v243
        %v271 = vunpack.c.l.b16 %v244
        %v272 = vunpack.c.h.b16 %v244
        %v273 = vunpack.c.l.b16 %v245
        %v274 = vunpack.c.h.b16 %v245
        %v275 = vunpack.c.l.b16 %v246
        %v276 = vunpack.c.h.b16 %v246
        %v277 = vunpack.c.l.b16 %v247
        %v278 = vunpack.c.h.b16 %v247
        %v279 = vunpack.c.l.b16 %v248
        %v280 = vunpack.c.h.b16 %v248
        %v281 = vunpack.c.l.b16 %v249
        %v282 = vunpack.c.h.b16 %v249
        %v283 = vpack.c.b16 %v271, %v269
        %v284 = vpack.c.b16 %v272, %v270
        %v285 = vpack.c.b16 %v275, %v273
        %v286 = vpack.c.b16 %v276, %v274
        %v287 = vpack.c.b16 %v279, %v277
        %v288 = vpack.c.b16 %v280, %v278
        %v289 = vpack.c.b16 %v281, %v281
        %v290 = vpack.c.b16 %v282, %v282
        %vm297 = vcmask 457728
        %v299 = vsel %vm297, %v261, 0
        %vm301 = vcmask 1043456
        %v303 = vsel %vm301, %v289, 0
        %v306 = vsel %vm301, %v290, 0
        %308 = vmatprep.subr.bf16.mxu0 %v284
        %309 = vmatpush1.bf16.msra.mxu0 %v283
        %310 = vmatprep.subr.bf16.mxu0 %v286
        %311 = vmatpush1.bf16.msra.mxu0 %v285
        %312 = vmatprep.subr.bf16.mxu0 %v288
        %313 = vmatpush1.bf16.msra.mxu0 %v287
        %314 = vmatprep.subr.bf16.mxu0 %v306
        %315 = vmatpush1.bf16.msra.mxu0 %v303
        %316 = vmatprep.subr.bf16.mxu0 0
        %317 = vmatpush1.bf16.msra.mxu0 0
        %318 = vmatprep.subr.bf16.mxu0 0
        %319 = vmatpush1.bf16.msra.mxu0 0
        %320 = vmatprep.subr.bf16.mxu0 0
        %321 = vmatpush1.bf16.msra.mxu0 0
        %322 = vmatprep.subr.bf16.mxu0 0
        %323 = vmatpush1.bf16.msra.mxu0 0
        %324 = vmatprep.subr.bf16.mxu0 0
        %325 = vmatpush1.bf16.msra.mxu0 0
        %326 = vmatprep.subr.bf16.mxu0 0
        %327 = vmatpush1.bf16.msra.mxu0 0
        %328 = vmatprep.subr.bf16.mxu0 0
        %329 = vmatpush1.bf16.msra.mxu0 0
        %330 = vmatprep.subr.bf16.mxu0 0
        %331 = vmatpush1.bf16.msra.mxu0 0
        %332 = vmatprep.subr.bf16.mxu0 0
        %333 = vmatpush1.bf16.msra.mxu0 0
        %334 = vmatprep.subr.bf16.mxu0 0
        %335 = vmatpush1.bf16.msra.mxu0 0
        %336 = vmatprep.subr.bf16.mxu0 0
        %337 = vmatpush1.bf16.msra.mxu0 0
        %338 = vmatprep.subr.bf16.mxu0 0
        %339 = vmatpush1.bf16.msra.mxu0 0
        %340 = vmatprep.mubr.bf16.mxu0 0
        %341 = vmatmul.mubr.bf16.gmra.mrb[0].mxu0 %v299
        %v342 = vpop.f32.mrb[0].mxu0
        %v343 = vadd.f32 %v254, %v342
        %v344 = vpop.f32.mrb[0].mxu0
        %v345 = vadd.f32 %v258, %v344
        %v346 = vpop.f32.mrb[0].mxu0
        %v347 = vpop.f32.mrb[0].mxu0
        %348 = vdwg.mxu0
        %v349 = vmax.f32 %v343, 0.0
        %v350 = vmax.f32 %v345, 0.0
        %v351 = vld [vmem:[#allocation2 + $0x4] sm:$0x1]
        %v352 = vunpack.c.l.bf16 %v351
        %v353 = vld [vmem:[#allocation2] sm:$0xf]
        %v354 = vpack.c.bf16 %v233, %v232
        %v355 = vpack.c.bf16 %v235, %v234
        %v356 = vpack.c.bf16 %v237, %v236
        %v357 = vpack.c.bf16 %v239, %v238
        %v358 = vlaneseq
        %v359 = vshrl.u32 %v358, 7
        %v360 = vsub.s32 0, %v359
        %v361 = vrot.slane %v352, %v360
        %vm362 = vcmask 64512
        %v364 = vsel %vm362, %v354, 0
        %v367 = vsel %vm362, %v355, 0
        %v370 = vsel %vm362, %v356, 0
        %v373 = vsel %vm362, %v357, 0
        %v376 = vsel %vm301, %v353, 0
        %378 = vmatprep.subr.bf16.mxu0 0
        %379 = vmatpush1.bf16.msra.mxu0 %v376
        %380 = vmatprep.subr.bf16.mxu0 0
        %381 = vmatpush1.bf16.msra.mxu0 0
        %382 = vmatprep.subr.bf16.mxu0 0
        %383 = vmatpush1.bf16.msra.mxu0 0
        %384 = vmatprep.subr.bf16.mxu0 0
        %385 = vmatpush1.bf16.msra.mxu0 0
        %386 = vmatprep.subr.bf16.mxu0 0
        %387 = vmatpush1.bf16.msra.mxu0 0
        %388 = vmatprep.subr.bf16.mxu0 0
        %389 = vmatpush1.bf16.msra.mxu0 0
        %390 = vmatprep.subr.bf16.mxu0 0
        %391 = vmatpush1.bf16.msra.mxu0 0
        %392 = vmatprep.subr.bf16.mxu0 0
        %393 = vmatpush1.bf16.msra.mxu0 0
        %394 = vmatprep.subr.bf16.mxu0 0
        %395 = vmatpush1.bf16.msra.mxu0 0
        %396 = vmatprep.subr.bf16.mxu0 0
        %397 = vmatpush1.bf16.msra.mxu0 0
        %398 = vmatprep.subr.bf16.mxu0 0
        %399 = vmatpush1.bf16.msra.mxu0 0
        %400 = vmatprep.subr.bf16.mxu0 0
        %401 = vmatpush1.bf16.msra.mxu0 0
        %402 = vmatprep.subr.bf16.mxu0 0
        %403 = vmatpush1.bf16.msra.mxu0 0
        %404 = vmatprep.subr.bf16.mxu0 0
        %405 = vmatpush1.bf16.msra.mxu0 0
        %406 = vmatprep.subr.bf16.mxu0 0
        %407 = vmatpush1.bf16.msra.mxu0 0
        %408 = vmatprep.subr.bf16.mxu0 0
        %409 = vmatpush1.bf16.msra.mxu0 0
        %410 = vmatprep.mubr.bf16.mxu0 0
        %411 = vmatmul.mubr.bf16.gmra.mrb[0].mxu0 %v364
        %v412 = vpop.f32.mrb[0].mxu0
        %v413 = vadd.f32 %v361, %v412
        %v414 = vpop.f32.mrb[0].mxu0
        %v415 = vpop.f32.mrb[0].mxu0
        %v416 = vadd.f32 %v361, %v415
        %v417 = vpop.f32.mrb[0].mxu0
        %418 = vmatprep.mubr.bf16.mxu0 0
        %419 = vmatmul.mubr.bf16.gmra.mrb[0].mxu0 %v367
        %v420 = vpop.f32.mrb[0].mxu0
        %v421 = vadd.f32 %v361, %v420
        %v422 = vpop.f32.mrb[0].mxu0
        %v423 = vpop.f32.mrb[0].mxu0
        %v424 = vadd.f32 %v361, %v423
        %v425 = vpop.f32.mrb[0].mxu0
        %426 = vmatprep.mubr.bf16.mxu0 0
        %427 = vmatmul.mubr.bf16.gmra.mrb[0].mxu0 %v370
        %v428 = vpop.f32.mrb[0].mxu0
        %v429 = vadd.f32 %v361, %v428
        %v430 = vpop.f32.mrb[0].mxu0
        %v431 = vpop.f32.mrb[0].mxu0
        %v432 = vadd.f32 %v361, %v431
        %v433 = vpop.f32.mrb[0].mxu0
        %434 = vmatprep.mubr.bf16.mxu0 0
        %435 = vmatmul.mubr.bf16.gmra.mrb[0].mxu0 %v373
        %v436 = vpop.f32.mrb[0].mxu0
        %v437 = vadd.f32 %v361, %v436
        %v438 = vpop.f32.mrb[0].mxu0
        %v439 = vpop.f32.mrb[0].mxu0
        %v440 = vadd.f32 %v361, %v439
        %v441 = vpop.f32.mrb[0].mxu0
        %442 = vdwg.mxu0
        %v443 = vld [vmem:[#allocation2 + $0x4] sm:$0x4]
        %v445 = vshrl.u32 %v443, 16
        %v446 = vpack.i.b16 %v445, %v445
        %v448 = vlaneseq
        %v449 = vshrl.u32 %v448, 7
        %v450 = vsub.s32 2, %v449
        %v451 = vrot.slane %v446, %v450
        %v452 = vunpack.c.l.bf16 %v451
        %v454 = vshrl.u32 %v351, 16
        %v455 = vpack.i.b16 %v454, %v454
        %v457 = vlaneseq
        %v458 = vshrl.u32 %v457, 7
        %v459 = vsub.s32 0, %v458
        %v460 = vrot.slane %v455, %v459
        %v461 = vunpack.c.l.bf16 %v460
        %v462 = vmul.f32 %v413, %v452
        %v463 = vxor.u32 %v462, 2147483648
        %v464 = vmul.f32 %v463, 1.442695
        %v465 = vpow.pop %v464
        %v466 = vadd.f32 %v465, 1.0
        %v467 = vrcp.pop %v466
        %v468 = vmul.f32 1.0, %v467
        %v469 = vmul.f32 %v468, 2.0
        %v470 = vsub.f32 %v469, 1.0
        %v471 = vmul.f32 %v468, 0.0
        %473 = vrot.lane.b32.xlu0 %v470, 64
        %v474 = vpop.permute.xlu0 %473
        %v476 = vmul.f32 %v468, %v474
        %478 = vrot.lane.b32.xlu0 %v476, 32
        %v479 = vpop.permute.xlu0 %478
        %v481 = vadd.f32 %v471, %v479
        %v482 = vtanh.pop %v481
        %484 = vrot.lane.b32.xlu0 %v482, 64
        %v485 = vpop.permute.xlu0 %484
        %v487 = vmul.f32 %v468, %v485
        %v488 = vld [vmem:[%s3 + $0x40] sm:$0xff]
        %v489 = vld [vmem:[%s3 + $0x48] sm:$0xff]
        %v490 = vld [vmem:[%s3 + $0x50] sm:$0xff]
        %v491 = vld [vmem:[%s3 + $0x58] sm:$0xff]
        %v492 = vld [vmem:[%s3 + $0x60] sm:$0xff]
        %v493 = vld [vmem:[%s3 + $0x68] sm:$0xff]
        %v494 = vld [vmem:[%s3 + $0x70] sm:$0xff]
        %v495 = vld [vmem:[%s3 + $0x78] sm:$0xff]
        %497 = vrot.lane.b32.xlu0 %v487, 32
        %v498 = vpop.permute.xlu0 %497
        %vm500 = vcmask 261120
        %v501 = vsel %vm500, %v498, 0.0
        %v502 = vpack.c.bf16 %v501, %v501
        %v511 = vunpack.c.l.b16 %v488
        %v512 = vunpack.c.h.b16 %v488
        %v513 = vunpack.c.l.b16 %v489
        %v514 = vunpack.c.h.b16 %v489
        %v515 = vunpack.c.l.b16 %v490
        %v516 = vunpack.c.h.b16 %v490
        %v517 = vunpack.c.l.b16 %v491
        %v518 = vunpack.c.h.b16 %v491
        %v519 = vunpack.c.l.b16 %v492
        %v520 = vunpack.c.h.b16 %v492
        %v521 = vunpack.c.l.b16 %v493
        %v522 = vunpack.c.h.b16 %v493
        %v523 = vunpack.c.l.b16 %v494
        %v524 = vunpack.c.h.b16 %v494
        %v525 = vunpack.c.l.b16 %v495
        %v526 = vunpack.c.h.b16 %v495
        %v527 = vpack.c.b16 %v513, %v511
        %v528 = vpack.c.b16 %v514, %v512
        %v529 = vpack.c.b16 %v517, %v515
        %v530 = vpack.c.b16 %v518, %v516
        %v531 = vpack.c.b16 %v521, %v519
        %v532 = vpack.c.b16 %v522, %v520
        %v533 = vpack.c.b16 %v525, %v523
        %v534 = vpack.c.b16 %v526, %v524
        %vm543 = vcmask 523264
        %v545 = vsel %vm543, %v502, 0
        %547 = vmatprep.subr.bf16.mxu0 %v528
        %548 = vmatpush1.bf16.msra.mxu0 %v527
        %549 = vmatprep.subr.bf16.mxu0 %v530
        %550 = vmatpush1.bf16.msra.mxu0 %v529
        %551 = vmatprep.subr.bf16.mxu0 %v532
        %552 = vmatpush1.bf16.msra.mxu0 %v531
        %553 = vmatprep.subr.bf16.mxu0 %v534
        %554 = vmatpush1.bf16.msra.mxu0 %v533
        %555 = vmatprep.subr.bf16.mxu0 0
        %556 = vmatpush1.bf16.msra.mxu0 0
        %557 = vmatprep.subr.bf16.mxu0 0
        %558 = vmatpush1.bf16.msra.mxu0 0
        %559 = vmatprep.subr.bf16.mxu0 0
        %560 = vmatpush1.bf16.msra.mxu0 0
        %561 = vmatprep.subr.bf16.mxu0 0
        %562 = vmatpush1.bf16.msra.mxu0 0
        %563 = vmatprep.subr.bf16.mxu0 0
        %564 = vmatpush1.bf16.msra.mxu0 0
        %565 = vmatprep.subr.bf16.mxu0 0
        %566 = vmatpush1.bf16.msra.mxu0 0
        %567 = vmatprep.subr.bf16.mxu0 0
        %568 = vmatpush1.bf16.msra.mxu0 0
        %569 = vmatprep.subr.bf16.mxu0 0
        %570 = vmatpush1.bf16.msra.mxu0 0
        %571 = vmatprep.subr.bf16.mxu0 0
        %572 = vmatpush1.bf16.msra.mxu0 0
        %573 = vmatprep.subr.bf16.mxu0 0
        %574 = vmatpush1.bf16.msra.mxu0 0
        %575 = vmatprep.subr.bf16.mxu0 0
        %576 = vmatpush1.bf16.msra.mxu0 0
        %577 = vmatprep.subr.bf16.mxu0 0
        %578 = vmatpush1.bf16.msra.mxu0 0
        %579 = vmatprep.mubr.bf16.mxu0 0
        %580 = vmatmul.mubr.bf16.gmra.mrb[0].mxu0 %v545
        %v581 = vpop.f32.mrb[0].mxu0
        %v582 = vadd.f32 0.0, %v581
        %v583 = vpop.f32.mrb[0].mxu0
        %v584 = vadd.f32 0.0, %v583
        %v585 = vpop.f32.mrb[0].mxu0
        %v586 = vpop.f32.mrb[0].mxu0
        %587 = vdwg.mxu0
        %v588 = vadd.f32 %v582, %v416
        %v589 = vmul.f32 %v588, %v452
        %v590 = vxor.u32 %v589, 2147483648
        %v591 = vmul.f32 %v590, 1.442695
        %v592 = vpow.pop %v591
        %v593 = vadd.f32 %v592, 1.0
        %v594 = vrcp.pop %v593
        %v595 = vmul.f32 1.0, %v594
        %v596 = vmul.f32 %v595, 2.0
        %v597 = vsub.f32 %v596, 1.0
        %v598 = vmul.f32 %v595, %v481
        %600 = vrot.lane.b32.xlu0 %v597, 64
        %v601 = vpop.permute.xlu0 %600
        %v603 = vmul.f32 %v595, %v601
        %605 = vrot.lane.b32.xlu0 %v603, 32
        %v606 = vpop.permute.xlu0 %605
        %v608 = vadd.f32 %v598, %v606
        %v609 = vtanh.pop %v608
        %611 = vrot.lane.b32.xlu0 %v609, 64
        %v612 = vpop.permute.xlu0 %611
        %v614 = vmul.f32 %v595, %v612
        %v615 = vadd.f32 %v584, %v461
        %v616 = vmul.f32 %v615, %v452
        %v617 = vxor.u32 %v616, 2147483648
        %v618 = vmul.f32 %v617, 1.442695
        %v619 = vpow.pop %v618
        %v620 = vadd.f32 %v619, 1.0
        %v621 = vrcp.pop %v620
        %v622 = vmul.f32 1.0, %v621
        %v623 = vmul.f32 %v622, 2.0
        %v624 = vsub.f32 %v623, 1.0
        %v625 = vmul.f32 %v622, 0.0
        %627 = vrot.lane.b32.xlu0 %v624, 64
        %v628 = vpop.permute.xlu0 %627
        %v630 = vmul.f32 %v622, %v628
        %632 = vrot.lane.b32.xlu0 %v630, 32
        %v633 = vpop.permute.xlu0 %632
        %v635 = vadd.f32 %v625, %v633
        %v636 = vtanh.pop %v635
        %638 = vrot.lane.b32.xlu0 %v636, 64
        %v639 = vpop.permute.xlu0 %638
        %v641 = vmul.f32 %v622, %v639
        %643 = vrot.lane.b32.xlu0 %v614, 32
        %v644 = vpop.permute.xlu0 %643
        %647 = vrot.lane.b32.xlu0 %v641, 64
        %v648 = vpop.permute.xlu0 %647
        %v650 = vsel %vm500, %v644, %v648
        %v651 = vpack.c.bf16 %v650, %v650
        %v653 = vsel %vm543, %v651, 0
        %655 = vmatprep.subr.bf16.mxu0 %v528
        %656 = vmatpush1.bf16.msra.mxu0 %v527
        %657 = vmatprep.subr.bf16.mxu0 %v530
        %658 = vmatpush1.bf16.msra.mxu0 %v529
        %659 = vmatprep.subr.bf16.mxu0 %v532
        %660 = vmatpush1.bf16.msra.mxu0 %v531
        %661 = vmatprep.subr.bf16.mxu0 %v534
        %662 = vmatpush1.bf16.msra.mxu0 %v533
        %663 = vmatprep.subr.bf16.mxu0 0
        %664 = vmatpush1.bf16.msra.mxu0 0
        %665 = vmatprep.subr.bf16.mxu0 0
        %666 = vmatpush1.bf16.msra.mxu0 0
        %667 = vmatprep.subr.bf16.mxu0 0
        %668 = vmatpush1.bf16.msra.mxu0 0
        %669 = vmatprep.subr.bf16.mxu0 0
        %670 = vmatpush1.bf16.msra.mxu0 0
        %671 = vmatprep.subr.bf16.mxu0 0
        %672 = vmatpush1.bf16.msra.mxu0 0
        %673 = vmatprep.subr.bf16.mxu0 0
        %674 = vmatpush1.bf16.msra.mxu0 0
        %675 = vmatprep.subr.bf16.mxu0 0
        %676 = vmatpush1.bf16.msra.mxu0 0
        %677 = vmatprep.subr.bf16.mxu0 0
        %678 = vmatpush1.bf16.msra.mxu0 0
        %679 = vmatprep.subr.bf16.mxu0 0
        %680 = vmatpush1.bf16.msra.mxu0 0
        %681 = vmatprep.subr.bf16.mxu0 0
        %682 = vmatpush1.bf16.msra.mxu0 0
        %683 = vmatprep.subr.bf16.mxu0 0
        %684 = vmatpush1.bf16.msra.mxu0 0
        %685 = vmatprep.subr.bf16.mxu0 0
        %686 = vmatpush1.bf16.msra.mxu0 0
        %687 = vmatprep.mubr.bf16.mxu0 0
        %688 = vmatmul.mubr.bf16.gmra.mrb[0].mxu0 %v653
        %v689 = vpop.f32.mrb[0].mxu0
        %v690 = vadd.f32 0.0, %v689
        %v691 = vpop.f32.mrb[0].mxu0
        %v692 = vadd.f32 0.0, %v691
        %v693 = vpop.f32.mrb[0].mxu0
        %v694 = vpop.f32.mrb[0].mxu0
        %695 = vdwg.mxu0
        %v696 = vadd.f32 %v690, %v421
        %v697 = vmul.f32 %v696, %v452
        %v698 = vxor.u32 %v697, 2147483648
        %v699 = vmul.f32 %v698, 1.442695
        %v700 = vpow.pop %v699
        %v701 = vadd.f32 %v700, 1.0
        %v702 = vrcp.pop %v701
        %v703 = vmul.f32 1.0, %v702
        %v704 = vmul.f32 %v703, 2.0
        %v705 = vsub.f32 %v704, 1.0
        %v706 = vmul.f32 %v703, %v608
        %708 = vrot.lane.b32.xlu0 %v705, 64
        %v709 = vpop.permute.xlu0 %708
        %v711 = vmul.f32 %v703, %v709
        %713 = vrot.lane.b32.xlu0 %v711, 32
        %v714 = vpop.permute.xlu0 %713
        %v716 = vadd.f32 %v706, %v714
        %v717 = vtanh.pop %v716
        %719 = vrot.lane.b32.xlu0 %v717, 64
        %v720 = vpop.permute.xlu0 %719
        %v722 = vmul.f32 %v703, %v720
        %v723 = vadd.f32 %v692, %v461
        %v724 = vmul.f32 %v723, %v452
        %v725 = vxor.u32 %v724, 2147483648
        %v726 = vmul.f32 %v725, 1.442695
        %v727 = vpow.pop %v726
        %v728 = vadd.f32 %v727, 1.0
        %v729 = vrcp.pop %v728
        %v730 = vmul.f32 1.0, %v729
        %v731 = vmul.f32 %v730, 2.0
        %v732 = vsub.f32 %v731, 1.0
        %v733 = vmul.f32 %v730, %v635
        %735 = vrot.lane.b32.xlu0 %v732, 64
        %v736 = vpop.permute.xlu0 %735
        %v738 = vmul.f32 %v730, %v736
        %740 = vrot.lane.b32.xlu0 %v738, 32
        %v741 = vpop.permute.xlu0 %740
        %v743 = vadd.f32 %v733, %v741
        %v744 = vtanh.pop %v743
        %746 = vrot.lane.b32.xlu0 %v744, 64
        %v747 = vpop.permute.xlu0 %746
        %v749 = vmul.f32 %v730, %v747
        %751 = vrot.lane.b32.xlu0 %v722, 32
        %v752 = vpop.permute.xlu0 %751
        %755 = vrot.lane.b32.xlu0 %v749, 64
        %v756 = vpop.permute.xlu0 %755
        %v758 = vsel %vm500, %v752, %v756
        %v759 = vpack.c.bf16 %v758, %v758
        %v761 = vsel %vm543, %v759, 0
        %763 = vmatprep.subr.bf16.mxu0 %v528
        %764 = vmatpush1.bf16.msra.mxu0 %v527
        %765 = vmatprep.subr.bf16.mxu0 %v530
        %766 = vmatpush1.bf16.msra.mxu0 %v529
        %767 = vmatprep.subr.bf16.mxu0 %v532
        %768 = vmatpush1.bf16.msra.mxu0 %v531
        %769 = vmatprep.subr.bf16.mxu0 %v534
        %770 = vmatpush1.bf16.msra.mxu0 %v533
        %771 = vmatprep.subr.bf16.mxu0 0
        %772 = vmatpush1.bf16.msra.mxu0 0
        %773 = vmatprep.subr.bf16.mxu0 0
        %774 = vmatpush1.bf16.msra.mxu0 0
        %775 = vmatprep.subr.bf16.mxu0 0
        %776 = vmatpush1.bf16.msra.mxu0 0
        %777 = vmatprep.subr.bf16.mxu0 0
        %778 = vmatpush1.bf16.msra.mxu0 0
        %779 = vmatprep.subr.bf16.mxu0 0
        %780 = vmatpush1.bf16.msra.mxu0 0
        %781 = vmatprep.subr.bf16.mxu0 0
        %782 = vmatpush1.bf16.msra.mxu0 0
        %783 = vmatprep.subr.bf16.mxu0 0
        %784 = vmatpush1.bf16.msra.mxu0 0
        %785 = vmatprep.subr.bf16.mxu0 0
        %786 = vmatpush1.bf16.msra.mxu0 0
        %787 = vmatprep.subr.bf16.mxu0 0
        %788 = vmatpush1.bf16.msra.mxu0 0
        %789 = vmatprep.subr.bf16.mxu0 0
        %790 = vmatpush1.bf16.msra.mxu0 0
        %791 = vmatprep.subr.bf16.mxu0 0
        %792 = vmatpush1.bf16.msra.mxu0 0
        %793 = vmatprep.subr.bf16.mxu0 0
        %794 = vmatpush1.bf16.msra.mxu0 0
        %795 = vmatprep.mubr.bf16.mxu0 0
        %796 = vmatmul.mubr.bf16.gmra.mrb[0].mxu0 %v761
        %v797 = vpop.f32.mrb[0].mxu0
        %v798 = vadd.f32 0.0, %v797
        %v799 = vpop.f32.mrb[0].mxu0
        %v800 = vadd.f32 0.0, %v799
        %v801 = vpop.f32.mrb[0].mxu0
        %v802 = vpop.f32.mrb[0].mxu0
        %803 = vdwg.mxu0
        %v804 = vadd.f32 %v798, %v424
        %v805 = vmul.f32 %v804, %v452
        %v806 = vxor.u32 %v805, 2147483648
        %v807 = vmul.f32 %v806, 1.442695
        %v808 = vpow.pop %v807
        %v809 = vadd.f32 %v808, 1.0
        %v810 = vrcp.pop %v809
        %v811 = vmul.f32 1.0, %v810
        %v812 = vmul.f32 %v811, 2.0
        %v813 = vsub.f32 %v812, 1.0
        %v814 = vmul.f32 %v811, %v716
        %816 = vrot.lane.b32.xlu0 %v813, 64
        %v817 = vpop.permute.xlu0 %816
        %v819 = vmul.f32 %v811, %v817
        %821 = vrot.lane.b32.xlu0 %v819, 32
        %v822 = vpop.permute.xlu0 %821
        %v824 = vadd.f32 %v814, %v822
        %v825 = vtanh.pop %v824
        %827 = vrot.lane.b32.xlu0 %v825, 64
        %v828 = vpop.permute.xlu0 %827
        %v830 = vmul.f32 %v811, %v828
        %v831 = vadd.f32 %v800, %v461
        %v832 = vmul.f32 %v831, %v452
        %v833 = vxor.u32 %v832, 2147483648
        %v834 = vmul.f32 %v833, 1.442695
        %v835 = vpow.pop %v834
        %v836 = vadd.f32 %v835, 1.0
        %v837 = vrcp.pop %v836
        %v838 = vmul.f32 1.0, %v837
        %v839 = vmul.f32 %v838, 2.0
        %v840 = vsub.f32 %v839, 1.0
        %v841 = vmul.f32 %v838, %v743
        %843 = vrot.lane.b32.xlu0 %v840, 64
        %v844 = vpop.permute.xlu0 %843
        %v846 = vmul.f32 %v838, %v844
        %848 = vrot.lane.b32.xlu0 %v846, 32
        %v849 = vpop.permute.xlu0 %848
        %v851 = vadd.f32 %v841, %v849
        %v852 = vtanh.pop %v851
        %854 = vrot.lane.b32.xlu0 %v852, 64
        %v855 = vpop.permute.xlu0 %854
        %v857 = vmul.f32 %v838, %v855
        %859 = vrot.lane.b32.xlu0 %v830, 32
        %v860 = vpop.permute.xlu0 %859
        %863 = vrot.lane.b32.xlu0 %v857, 64
        %v864 = vpop.permute.xlu0 %863
        %v866 = vsel %vm500, %v860, %v864
        %v867 = vpack.c.bf16 %v866, %v866
        %v869 = vsel %vm543, %v867, 0
        %871 = vmatprep.subr.bf16.mxu0 %v528
        %872 = vmatpush1.bf16.msra.mxu0 %v527
        %873 = vmatprep.subr.bf16.mxu0 %v530
        %874 = vmatpush1.bf16.msra.mxu0 %v529
        %875 = vmatprep.subr.bf16.mxu0 %v532
        %876 = vmatpush1.bf16.msra.mxu0 %v531
        %877 = vmatprep.subr.bf16.mxu0 %v534
        %878 = vmatpush1.bf16.msra.mxu0 %v533
        %879 = vmatprep.subr.bf16.mxu0 0
        %880 = vmatpush1.bf16.msra.mxu0 0
        %881 = vmatprep.subr.bf16.mxu0 0
        %882 = vmatpush1.bf16.msra.mxu0 0
        %883 = vmatprep.subr.bf16.mxu0 0
        %884 = vmatpush1.bf16.msra.mxu0 0
        %885 = vmatprep.subr.bf16.mxu0 0
        %886 = vmatpush1.bf16.msra.mxu0 0
        %887 = vmatprep.subr.bf16.mxu0 0
        %888 = vmatpush1.bf16.msra.mxu0 0
        %889 = vmatprep.subr.bf16.mxu0 0
        %890 = vmatpush1.bf16.msra.mxu0 0
        %891 = vmatprep.subr.bf16.mxu0 0
        %892 = vmatpush1.bf16.msra.mxu0 0
        %893 = vmatprep.subr.bf16.mxu0 0
        %894 = vmatpush1.bf16.msra.mxu0 0
        %895 = vmatprep.subr.bf16.mxu0 0
        %896 = vmatpush1.bf16.msra.mxu0 0
        %897 = vmatprep.subr.bf16.mxu0 0
        %898 = vmatpush1.bf16.msra.mxu0 0
        %899 = vmatprep.subr.bf16.mxu0 0
        %900 = vmatpush1.bf16.msra.mxu0 0
        %901 = vmatprep.subr.bf16.mxu0 0
        %902 = vmatpush1.bf16.msra.mxu0 0
        %903 = vmatprep.mubr.bf16.mxu0 0
        %904 = vmatmul.mubr.bf16.gmra.mrb[0].mxu0 %v869
        %v905 = vpop.f32.mrb[0].mxu0
        %v906 = vadd.f32 0.0, %v905
        %v907 = vpop.f32.mrb[0].mxu0
        %v908 = vadd.f32 0.0, %v907
        %v909 = vpop.f32.mrb[0].mxu0
        %v910 = vpop.f32.mrb[0].mxu0
        %911 = vdwg.mxu0
        %v912 = vadd.f32 %v906, %v429
        %v913 = vmul.f32 %v912, %v452
        %v914 = vxor.u32 %v913, 2147483648
        %v915 = vmul.f32 %v914, 1.442695
        %v916 = vpow.pop %v915
        %v917 = vadd.f32 %v916, 1.0
        %v918 = vrcp.pop %v917
        %v919 = vmul.f32 1.0, %v918
        %v920 = vmul.f32 %v919, 2.0
        %v921 = vsub.f32 %v920, 1.0
        %v922 = vmul.f32 %v919, %v824
        %924 = vrot.lane.b32.xlu0 %v921, 64
        %v925 = vpop.permute.xlu0 %924
        %v927 = vmul.f32 %v919, %v925
        %929 = vrot.lane.b32.xlu0 %v927, 32
        %v930 = vpop.permute.xlu0 %929
        %v932 = vadd.f32 %v922, %v930
        %v933 = vtanh.pop %v932
        %935 = vrot.lane.b32.xlu0 %v933, 64
        %v936 = vpop.permute.xlu0 %935
        %v938 = vmul.f32 %v919, %v936
        %v939 = vadd.f32 %v908, %v461
        %v940 = vmul.f32 %v939, %v452
        %v941 = vxor.u32 %v940, 2147483648
        %v942 = vmul.f32 %v941, 1.442695
        %v943 = vpow.pop %v942
        %v944 = vadd.f32 %v943, 1.0
        %v945 = vrcp.pop %v944
        %v946 = vmul.f32 1.0, %v945
        %v947 = vmul.f32 %v946, 2.0
        %v948 = vsub.f32 %v947, 1.0
        %v949 = vmul.f32 %v946, %v851
        %951 = vrot.lane.b32.xlu0 %v948, 64
        %v952 = vpop.permute.xlu0 %951
        %v954 = vmul.f32 %v946, %v952
        %956 = vrot.lane.b32.xlu0 %v954, 32
        %v957 = vpop.permute.xlu0 %956
        %v959 = vadd.f32 %v949, %v957
        %v960 = vtanh.pop %v959
        %962 = vrot.lane.b32.xlu0 %v960, 64
        %v963 = vpop.permute.xlu0 %962
        %v965 = vmul.f32 %v946, %v963
        %967 = vrot.lane.b32.xlu0 %v938, 32
        %v968 = vpop.permute.xlu0 %967
        %971 = vrot.lane.b32.xlu0 %v965, 64
        %v972 = vpop.permute.xlu0 %971
        %v974 = vsel %vm500, %v968, %v972
        %v975 = vpack.c.bf16 %v974, %v974
        %v977 = vsel %vm543, %v975, 0
        %979 = vmatprep.subr.bf16.mxu0 %v528
        %980 = vmatpush1.bf16.msra.mxu0 %v527
        %981 = vmatprep.subr.bf16.mxu0 %v530
        %982 = vmatpush1.bf16.msra.mxu0 %v529
        %983 = vmatprep.subr.bf16.mxu0 %v532
        %984 = vmatpush1.bf16.msra.mxu0 %v531
        %985 = vmatprep.subr.bf16.mxu0 %v534
        %986 = vmatpush1.bf16.msra.mxu0 %v533
        %987 = vmatprep.subr.bf16.mxu0 0
        %988 = vmatpush1.bf16.msra.mxu0 0
        %989 = vmatprep.subr.bf16.mxu0 0
        %990 = vmatpush1.bf16.msra.mxu0 0
        %991 = vmatprep.subr.bf16.mxu0 0
        %992 = vmatpush1.bf16.msra.mxu0 0
        %993 = vmatprep.subr.bf16.mxu0 0
        %994 = vmatpush1.bf16.msra.mxu0 0
        %995 = vmatprep.subr.bf16.mxu0 0
        %996 = vmatpush1.bf16.msra.mxu0 0
        %997 = vmatprep.subr.bf16.mxu0 0
        %998 = vmatpush1.bf16.msra.mxu0 0
        %999 = vmatprep.subr.bf16.mxu0 0
        %1000 = vmatpush1.bf16.msra.mxu0 0
        %1001 = vmatprep.subr.bf16.mxu0 0
        %1002 = vmatpush1.bf16.msra.mxu0 0
        %1003 = vmatprep.subr.bf16.mxu0 0
        %1004 = vmatpush1.bf16.msra.mxu0 0
        %1005 = vmatprep.subr.bf16.mxu0 0
        %1006 = vmatpush1.bf16.msra.mxu0 0
        %1007 = vmatprep.subr.bf16.mxu0 0
        %1008 = vmatpush1.bf16.msra.mxu0 0
        %1009 = vmatprep.subr.bf16.mxu0 0
        %1010 = vmatpush1.bf16.msra.mxu0 0
        %1011 = vmatprep.mubr.bf16.mxu0 0
        %1012 = vmatmul.mubr.bf16.gmra.mrb[0].mxu0 %v977
        %v1013 = vpop.f32.mrb[0].mxu0
        %v1014 = vadd.f32 0.0, %v1013
        %v1015 = vpop.f32.mrb[0].mxu0
        %v1016 = vadd.f32 0.0, %v1015
        %v1017 = vpop.f32.mrb[0].mxu0
        %v1018 = vpop.f32.mrb[0].mxu0
        %1019 = vdwg.mxu0
        %v1020 = vadd.f32 %v1014, %v432
        %v1021 = vmul.f32 %v1020, %v452
        %v1022 = vxor.u32 %v1021, 2147483648
        %v1023 = vmul.f32 %v1022, 1.442695
        %v1024 = vpow.pop %v1023
        %v1025 = vadd.f32 %v1024, 1.0
        %v1026 = vrcp.pop %v1025
        %v1027 = vmul.f32 1.0, %v1026
        %v1028 = vmul.f32 %v1027, 2.0
        %v1029 = vsub.f32 %v1028, 1.0
        %v1030 = vmul.f32 %v1027, %v932
        %1032 = vrot.lane.b32.xlu0 %v1029, 64
        %v1033 = vpop.permute.xlu0 %1032
        %v1035 = vmul.f32 %v1027, %v1033
        %1037 = vrot.lane.b32.xlu0 %v1035, 32
        %v1038 = vpop.permute.xlu0 %1037
        %v1040 = vadd.f32 %v1030, %v1038
        %v1041 = vtanh.pop %v1040
        %1043 = vrot.lane.b32.xlu0 %v1041, 64
        %v1044 = vpop.permute.xlu0 %1043
        %v1046 = vmul.f32 %v1027, %v1044
        %v1047 = vadd.f32 %v1016, %v461
        %v1048 = vmul.f32 %v1047, %v452
        %v1049 = vxor.u32 %v1048, 2147483648
        %v1050 = vmul.f32 %v1049, 1.442695
        %v1051 = vpow.pop %v1050
        %v1052 = vadd.f32 %v1051, 1.0
        %v1053 = vrcp.pop %v1052
        %v1054 = vmul.f32 1.0, %v1053
        %v1055 = vmul.f32 %v1054, 2.0
        %v1056 = vsub.f32 %v1055, 1.0
        %v1057 = vmul.f32 %v1054, %v959
        %1059 = vrot.lane.b32.xlu0 %v1056, 64
        %v1060 = vpop.permute.xlu0 %1059
        %v1062 = vmul.f32 %v1054, %v1060
        %1064 = vrot.lane.b32.xlu0 %v1062, 32
        %v1065 = vpop.permute.xlu0 %1064
        %v1067 = vadd.f32 %v1057, %v1065
        %v1068 = vtanh.pop %v1067
        %1070 = vrot.lane.b32.xlu0 %v1068, 64
        %v1071 = vpop.permute.xlu0 %1070
        %v1073 = vmul.f32 %v1054, %v1071
        %1075 = vrot.lane.b32.xlu0 %v1046, 32
        %v1076 = vpop.permute.xlu0 %1075
        %1079 = vrot.lane.b32.xlu0 %v1073, 64
        %v1080 = vpop.permute.xlu0 %1079
        %v1082 = vsel %vm500, %v1076, %v1080
        %v1083 = vpack.c.bf16 %v1082, %v1082
        %v1085 = vsel %vm543, %v1083, 0
        %1087 = vmatprep.subr.bf16.mxu0 %v528
        %1088 = vmatpush1.bf16.msra.mxu0 %v527
        %1089 = vmatprep.subr.bf16.mxu0 %v530
        %1090 = vmatpush1.bf16.msra.mxu0 %v529
        %1091 = vmatprep.subr.bf16.mxu0 %v532
        %1092 = vmatpush1.bf16.msra.mxu0 %v531
        %1093 = vmatprep.subr.bf16.mxu0 %v534
        %1094 = vmatpush1.bf16.msra.mxu0 %v533
        %1095 = vmatprep.subr.bf16.mxu0 0
        %1096 = vmatpush1.bf16.msra.mxu0 0
        %1097 = vmatprep.subr.bf16.mxu0 0
        %1098 = vmatpush1.bf16.msra.mxu0 0
        %1099 = vmatprep.subr.bf16.mxu0 0
        %1100 = vmatpush1.bf16.msra.mxu0 0
        %1101 = vmatprep.subr.bf16.mxu0 0
        %1102 = vmatpush1.bf16.msra.mxu0 0
        %1103 = vmatprep.subr.bf16.mxu0 0
        %1104 = vmatpush1.bf16.msra.mxu0 0
        %1105 = vmatprep.subr.bf16.mxu0 0
        %1106 = vmatpush1.bf16.msra.mxu0 0
        %1107 = vmatprep.subr.bf16.mxu0 0
        %1108 = vmatpush1.bf16.msra.mxu0 0
        %1109 = vmatprep.subr.bf16.mxu0 0
        %1110 = vmatpush1.bf16.msra.mxu0 0
        %1111 = vmatprep.subr.bf16.mxu0 0
        %1112 = vmatpush1.bf16.msra.mxu0 0
        %1113 = vmatprep.subr.bf16.mxu0 0
        %1114 = vmatpush1.bf16.msra.mxu0 0
        %1115 = vmatprep.subr.bf16.mxu0 0
        %1116 = vmatpush1.bf16.msra.mxu0 0
        %1117 = vmatprep.subr.bf16.mxu0 0
        %1118 = vmatpush1.bf16.msra.mxu0 0
        %1119 = vmatprep.mubr.bf16.mxu0 0
        %1120 = vmatmul.mubr.bf16.gmra.mrb[0].mxu0 %v1085
        %v1121 = vpop.f32.mrb[0].mxu0
        %v1122 = vadd.f32 0.0, %v1121
        %v1123 = vpop.f32.mrb[0].mxu0
        %v1124 = vadd.f32 0.0, %v1123
        %v1125 = vpop.f32.mrb[0].mxu0
        %v1126 = vpop.f32.mrb[0].mxu0
        %1127 = vdwg.mxu0
        %v1128 = vadd.f32 %v1122, %v437
        %v1129 = vmul.f32 %v1128, %v452
        %v1130 = vxor.u32 %v1129, 2147483648
        %v1131 = vmul.f32 %v1130, 1.442695
        %v1132 = vpow.pop %v1131
        %v1133 = vadd.f32 %v1132, 1.0
        %v1134 = vrcp.pop %v1133
        %v1135 = vmul.f32 1.0, %v1134
        %v1136 = vmul.f32 %v1135, 2.0
        %v1137 = vsub.f32 %v1136, 1.0
        %v1138 = vmul.f32 %v1135, %v1040
        %1140 = vrot.lane.b32.xlu0 %v1137, 64
        %v1141 = vpop.permute.xlu0 %1140
        %v1143 = vmul.f32 %v1135, %v1141
        %1145 = vrot.lane.b32.xlu0 %v1143, 32
        %v1146 = vpop.permute.xlu0 %1145
        %v1148 = vadd.f32 %v1138, %v1146
        %v1149 = vtanh.pop %v1148
        %1151 = vrot.lane.b32.xlu0 %v1149, 64
        %v1152 = vpop.permute.xlu0 %1151
        %v1154 = vmul.f32 %v1135, %v1152
        %v1155 = vadd.f32 %v1124, %v461
        %v1156 = vmul.f32 %v1155, %v452
        %v1157 = vxor.u32 %v1156, 2147483648
        %v1158 = vmul.f32 %v1157, 1.442695
        %v1159 = vpow.pop %v1158
        %v1160 = vadd.f32 %v1159, 1.0
        %v1161 = vrcp.pop %v1160
        %v1162 = vmul.f32 1.0, %v1161
        %v1163 = vmul.f32 %v1162, 2.0
        %v1164 = vsub.f32 %v1163, 1.0
        %v1165 = vmul.f32 %v1162, %v1067
        %1167 = vrot.lane.b32.xlu0 %v1164, 64
        %v1168 = vpop.permute.xlu0 %1167
        %v1170 = vmul.f32 %v1162, %v1168
        %1172 = vrot.lane.b32.xlu0 %v1170, 32
        %v1173 = vpop.permute.xlu0 %1172
        %v1175 = vadd.f32 %v1165, %v1173
        %v1176 = vtanh.pop %v1175
        %1178 = vrot.lane.b32.xlu0 %v1176, 64
        %v1179 = vpop.permute.xlu0 %1178
        %v1181 = vmul.f32 %v1162, %v1179
        %1183 = vrot.lane.b32.xlu0 %v1154, 32
        %v1184 = vpop.permute.xlu0 %1183
        %1187 = vrot.lane.b32.xlu0 %v1181, 64
        %v1188 = vpop.permute.xlu0 %1187
        %v1190 = vsel %vm500, %v1184, %v1188
        %v1191 = vpack.c.bf16 %v1190, %v1190
        %v1193 = vsel %vm543, %v1191, 0
        %1195 = vmatprep.subr.bf16.mxu0 %v528
        %1196 = vmatpush1.bf16.msra.mxu0 %v527
        %1197 = vmatprep.subr.bf16.mxu0 %v530
        %1198 = vmatpush1.bf16.msra.mxu0 %v529
        %1199 = vmatprep.subr.bf16.mxu0 %v532
        %1200 = vmatpush1.bf16.msra.mxu0 %v531
        %1201 = vmatprep.subr.bf16.mxu0 %v534
        %1202 = vmatpush1.bf16.msra.mxu0 %v533
        %1203 = vmatprep.subr.bf16.mxu0 0
        %1204 = vmatpush1.bf16.msra.mxu0 0
        %1205 = vmatprep.subr.bf16.mxu0 0
        %1206 = vmatpush1.bf16.msra.mxu0 0
        %1207 = vmatprep.subr.bf16.mxu0 0
        %1208 = vmatpush1.bf16.msra.mxu0 0
        %1209 = vmatprep.subr.bf16.mxu0 0
        %1210 = vmatpush1.bf16.msra.mxu0 0
        %1211 = vmatprep.subr.bf16.mxu0 0
        %1212 = vmatpush1.bf16.msra.mxu0 0
        %1213 = vmatprep.subr.bf16.mxu0 0
        %1214 = vmatpush1.bf16.msra.mxu0 0
        %1215 = vmatprep.subr.bf16.mxu0 0
        %1216 = vmatpush1.bf16.msra.mxu0 0
        %1217 = vmatprep.subr.bf16.mxu0 0
        %1218 = vmatpush1.bf16.msra.mxu0 0
        %1219 = vmatprep.subr.bf16.mxu0 0
        %1220 = vmatpush1.bf16.msra.mxu0 0
        %1221 = vmatprep.subr.bf16.mxu0 0
        %1222 = vmatpush1.bf16.msra.mxu0 0
        %1223 = vmatprep.subr.bf16.mxu0 0
        %1224 = vmatpush1.bf16.msra.mxu0 0
        %1225 = vmatprep.subr.bf16.mxu0 0
        %1226 = vmatpush1.bf16.msra.mxu0 0
        %1227 = vmatprep.mubr.bf16.mxu0 0
        %1228 = vmatmul.mubr.bf16.gmra.mrb[0].mxu0 %v1193
        %v1229 = vpop.f32.mrb[0].mxu0
        %v1230 = vadd.f32 0.0, %v1229
        %v1231 = vpop.f32.mrb[0].mxu0
        %v1232 = vadd.f32 0.0, %v1231
        %v1233 = vpop.f32.mrb[0].mxu0
        %v1234 = vpop.f32.mrb[0].mxu0
        %1235 = vdwg.mxu0
        %v1236 = vadd.f32 %v1230, %v440
        %v1237 = vmul.f32 %v1236, %v452
        %v1238 = vxor.u32 %v1237, 2147483648
        %v1239 = vmul.f32 %v1238, 1.442695
        %v1240 = vpow.pop %v1239
        %v1241 = vadd.f32 %v1240, 1.0
        %v1242 = vrcp.pop %v1241
        %v1243 = vmul.f32 1.0, %v1242
        %v1244 = vmul.f32 %v1243, 2.0
        %v1245 = vsub.f32 %v1244, 1.0
        %v1246 = vmul.f32 %v1243, %v1148
        %1248 = vrot.lane.b32.xlu0 %v1245, 64
        %v1249 = vpop.permute.xlu0 %1248
        %v1251 = vmul.f32 %v1243, %v1249
        %1253 = vrot.lane.b32.xlu0 %v1251, 32
        %v1254 = vpop.permute.xlu0 %1253
        %v1256 = vadd.f32 %v1246, %v1254
        %v1257 = vtanh.pop %v1256
        %1259 = vrot.lane.b32.xlu0 %v1257, 64
        %v1260 = vpop.permute.xlu0 %1259
        %v1262 = vmul.f32 %v1243, %v1260
        %v1263 = vadd.f32 %v1232, %v461
        %v1264 = vmul.f32 %v1263, %v452
        %v1265 = vxor.u32 %v1264, 2147483648
        %v1266 = vmul.f32 %v1265, 1.442695
        %v1267 = vpow.pop %v1266
        %v1268 = vadd.f32 %v1267, 1.0
        %v1269 = vrcp.pop %v1268
        %v1270 = vmul.f32 1.0, %v1269
        %v1271 = vmul.f32 %v1270, 2.0
        %v1272 = vsub.f32 %v1271, 1.0
        %v1273 = vmul.f32 %v1270, %v1175
        %1275 = vrot.lane.b32.xlu0 %v1272, 64
        %v1276 = vpop.permute.xlu0 %1275
        %v1278 = vmul.f32 %v1270, %v1276
        %1280 = vrot.lane.b32.xlu0 %v1278, 32
        %v1281 = vpop.permute.xlu0 %1280
        %v1283 = vadd.f32 %v1273, %v1281
        %v1284 = vtanh.pop %v1283
        %1286 = vrot.lane.b32.xlu0 %v1284, 64
        %v1287 = vpop.permute.xlu0 %1286
        %v1289 = vmul.f32 %v1270, %v1287
        %1291 = vrot.lane.b32.xlu0 %v1262, 32
        %v1292 = vpop.permute.xlu0 %1291
        %1295 = vrot.lane.b32.xlu0 %v1289, 64
        %v1296 = vpop.permute.xlu0 %1295
        %v1298 = vsel %vm500, %v1292, %v1296
        %v1299 = vpack.c.bf16 %v1298, %v1298
        %v1301 = vsel %vm543, %v1299, 0
        %1303 = vmatprep.subr.bf16.mxu0 %v528
        %1304 = vmatpush1.bf16.msra.mxu0 %v527
        %1305 = vmatprep.subr.bf16.mxu0 %v530
        %1306 = vmatpush1.bf16.msra.mxu0 %v529
        %1307 = vmatprep.subr.bf16.mxu0 %v532
        %1308 = vmatpush1.bf16.msra.mxu0 %v531
        %1309 = vmatprep.subr.bf16.mxu0 %v534
        %1310 = vmatpush1.bf16.msra.mxu0 %v533
        %1311 = vmatprep.subr.bf16.mxu0 0
        %1312 = vmatpush1.bf16.msra.mxu0 0
        %1313 = vmatprep.subr.bf16.mxu0 0
        %1314 = vmatpush1.bf16.msra.mxu0 0
        %1315 = vmatprep.subr.bf16.mxu0 0
        %1316 = vmatpush1.bf16.msra.mxu0 0
        %1317 = vmatprep.subr.bf16.mxu0 0
        %1318 = vmatpush1.bf16.msra.mxu0 0
        %1319 = vmatprep.subr.bf16.mxu0 0
        %1320 = vmatpush1.bf16.msra.mxu0 0
        %1321 = vmatprep.subr.bf16.mxu0 0
        %1322 = vmatpush1.bf16.msra.mxu0 0
        %1323 = vmatprep.subr.bf16.mxu0 0
        %1324 = vmatpush1.bf16.msra.mxu0 0
        %1325 = vmatprep.subr.bf16.mxu0 0
        %1326 = vmatpush1.bf16.msra.mxu0 0
        %1327 = vmatprep.subr.bf16.mxu0 0
        %1328 = vmatpush1.bf16.msra.mxu0 0
        %1329 = vmatprep.subr.bf16.mxu0 0
        %1330 = vmatpush1.bf16.msra.mxu0 0
        %1331 = vmatprep.subr.bf16.mxu0 0
        %1332 = vmatpush1.bf16.msra.mxu0 0
        %1333 = vmatprep.subr.bf16.mxu0 0
        %1334 = vmatpush1.bf16.msra.mxu0 0
        %1335 = vmatprep.mubr.bf16.mxu0 0
        %1336 = vmatmul.mubr.bf16.gmra.mrb[0].mxu0 %v1301
        %v1337 = vpop.f32.mrb[0].mxu0
        %v1338 = vpop.f32.mrb[0].mxu0
        %v1339 = vadd.f32 0.0, %v1338
        %v1340 = vpop.f32.mrb[0].mxu0
        %v1341 = vpop.f32.mrb[0].mxu0
        %1342 = vdwg.mxu0
        %v1343 = vadd.f32 %v1339, %v461
        %v1344 = vmul.f32 %v1343, %v452
        %v1345 = vxor.u32 %v1344, 2147483648
        %v1346 = vmul.f32 %v1345, 1.442695
        %v1347 = vpow.pop %v1346
        %v1348 = vadd.f32 %v1347, 1.0
        %v1349 = vrcp.pop %v1348
        %v1350 = vmul.f32 1.0, %v1349
        %v1351 = vmul.f32 %v1350, 2.0
        %v1352 = vsub.f32 %v1351, 1.0
        %v1353 = vmul.f32 %v1350, %v1283
        %1355 = vrot.lane.b32.xlu0 %v1352, 64
        %v1356 = vpop.permute.xlu0 %1355
        %v1358 = vmul.f32 %v1350, %v1356
        %1360 = vrot.lane.b32.xlu0 %v1358, 32
        %v1361 = vpop.permute.xlu0 %1360
        %v1363 = vadd.f32 %v1353, %v1361
        %v1364 = vtanh.pop %v1363
        %1366 = vrot.lane.b32.xlu0 %v1364, 64
        %v1367 = vpop.permute.xlu0 %1366
        %v1369 = vmul.f32 %v1350, %v1367
        %1371 = vrot.lane.b32.xlu0 %v1369, 56
        %v1372 = vpop.permute.xlu0 %1371
        %vm1374 = vcmask 195584
        %v1375 = vsel %vm1374, %v231, %v1372
        %v1376 = vld [vmem:[#allocation2 + $0x8] sm:$0xf]
        %v1377 = vld [vmem:[#allocation2 + $0xc] sm:$0xf]
        %v1378 = vld [vmem:[#allocation2 + $0x10] sm:$0xf]
        %v1379 = vld [vmem:[#allocation2 + $0x14] sm:$0xf]
        %v1380 = vld [vmem:[#allocation2 + $0x18] sm:$0xf]
        %v1381 = vld [vmem:[#allocation2 + $0x1c] sm:$0xf]
        %v1382 = vld [vmem:[#allocation2 + $0x20] sm:$0xf]
        %v1383 = vpack.c.bf16 %v1375, %v1375
        %v1384 = vld [vmem:[#allocation2 + $0x84] sm:$0xf]
        %v1385 = vld [vmem:[#allocation2 + $0x88] sm:$0xf]
        %v1386 = vld [vmem:[#allocation2 + $0x8c] sm:$0xf]
        %v1387 = vld [vmem:[#allocation2 + $0x90] sm:$0xf]
        %v1388 = vld [vmem:[#allocation2 + $0x94] sm:$0xf]
        %v1389 = vld [vmem:[#allocation2 + $0x98] sm:$0xf]
        %v1390 = vld [vmem:[#allocation2 + $0x9c] sm:$0xf]
        %v1391 = vld [vmem:[#allocation2 + $0xa0] sm:$0xf]
        %v1392 = vld [vmem:[#allocation2 + $0xa4] sm:$0xf]
        %v1393 = vld [vmem:[#allocation2 + $0xa8] sm:$0xf]
        %v1394 = vld [vmem:[#allocation2 + $0xac] sm:$0xf]
        %v1395 = vld [vmem:[#allocation2 + $0xb0] sm:$0xf]
        %v1396 = vld [vmem:[#allocation2 + $0xb4] sm:$0xf]
        %v1397 = vld [vmem:[#allocation2 + $0xb8] sm:$0xf]
        %v1398 = vld [vmem:[#allocation2 + $0xbc] sm:$0xf]
        %v1399 = vld [vmem:[#allocation2 + $0xc0] sm:$0xf]
        %v1400 = vld [vmem:[#allocation2 + $0xc4] sm:$0xf]
        %v1401 = vld [vmem:[#allocation2 + $0xc8] sm:$0xf]
        %v1402 = vld [vmem:[#allocation2 + $0xcc] sm:$0xf]
        %v1403 = vld [vmem:[#allocation2 + $0xd0] sm:$0xf]
        %v1404 = vld [vmem:[#allocation2 + $0xd4] sm:$0xf]
        %v1405 = vld [vmem:[#allocation2 + $0xd8] sm:$0xf]
        %v1406 = vld [vmem:[#allocation2 + $0xdc] sm:$0xf]
        %v1407 = vld [vmem:[#allocation2 + $0xe0] sm:$0xf]
        %v1408 = vld [vmem:[#allocation2 + $0xe4] sm:$0xf]
        %v1409 = vld [vmem:[#allocation2 + $0xe8] sm:$0xf]
        %v1410 = vld [vmem:[#allocation2 + $0xec] sm:$0xf]
        %v1411 = vld [vmem:[#allocation2 + $0xf0] sm:$0xf]
        %v1412 = vld [vmem:[#allocation2 + $0xf4] sm:$0xf]
        %v1413 = vld [vmem:[#allocation2 + $0xf8] sm:$0xf]
        %v1414 = vld [vmem:[#allocation2 + $0xfc] sm:$0xf]
        %v1415 = vld [vmem:[#allocation2 + $0x100] sm:$0xf]
        %v1416 = vpack.c.bf16 %v349, %v349
        %v1417 = vpack.c.bf16 %v350, %v350
        %v1450 = vunpack.c.l.b16 %v1384
        %v1451 = vunpack.c.l.b16 %v1385
        %v1452 = vunpack.c.l.b16 %v1386
        %v1453 = vunpack.c.l.b16 %v1387
        %v1454 = vunpack.c.l.b16 %v1388
        %v1455 = vunpack.c.l.b16 %v1389
        %v1456 = vunpack.c.l.b16 %v1390
        %v1457 = vunpack.c.l.b16 %v1391
        %v1458 = vunpack.c.l.b16 %v1392
        %v1459 = vunpack.c.l.b16 %v1393
        %v1460 = vunpack.c.l.b16 %v1394
        %v1461 = vunpack.c.l.b16 %v1395
        %v1462 = vunpack.c.l.b16 %v1396
        %v1463 = vunpack.c.l.b16 %v1397
        %v1464 = vunpack.c.l.b16 %v1398
        %v1465 = vunpack.c.l.b16 %v1399
        %v1466 = vunpack.c.l.b16 %v1400
        %v1467 = vunpack.c.l.b16 %v1401
        %v1468 = vunpack.c.l.b16 %v1402
        %v1469 = vunpack.c.l.b16 %v1403
        %v1470 = vunpack.c.l.b16 %v1404
        %v1471 = vunpack.c.l.b16 %v1405
        %v1472 = vunpack.c.l.b16 %v1406
        %v1473 = vunpack.c.l.b16 %v1407
        %v1474 = vunpack.c.l.b16 %v1408
        %v1475 = vunpack.c.l.b16 %v1409
        %v1476 = vunpack.c.l.b16 %v1410
        %v1477 = vunpack.c.l.b16 %v1411
        %v1478 = vunpack.c.l.b16 %v1412
        %v1479 = vunpack.c.l.b16 %v1413
        %v1480 = vunpack.c.l.b16 %v1414
        %v1481 = vunpack.c.l.b16 %v1415
        %v1482 = vpack.c.b16 %v1451, %v1450
        %v1483 = vpack.c.b16 %v1453, %v1452
        %v1484 = vpack.c.b16 %v1455, %v1454
        %v1485 = vpack.c.b16 %v1457, %v1456
        %v1486 = vpack.c.b16 %v1459, %v1458
        %v1487 = vpack.c.b16 %v1461, %v1460
        %v1488 = vpack.c.b16 %v1463, %v1462
        %v1489 = vpack.c.b16 %v1465, %v1464
        %v1490 = vpack.c.b16 %v1467, %v1466
        %v1491 = vpack.c.b16 %v1469, %v1468
        %v1492 = vpack.c.b16 %v1471, %v1470
        %v1493 = vpack.c.b16 %v1473, %v1472
        %v1494 = vpack.c.b16 %v1475, %v1474
        %v1495 = vpack.c.b16 %v1477, %v1476
        %v1496 = vpack.c.b16 %v1479, %v1478
        %v1497 = vpack.c.b16 %v1481, %v1480
        %1514 = vmatprep.subr.bf16.mxu0 0
        %1515 = vmatpush1.bf16.msra.mxu0 %v1482
        %1516 = vmatprep.subr.bf16.mxu0 0
        %1517 = vmatpush1.bf16.msra.mxu0 %v1483
        %1518 = vmatprep.subr.bf16.mxu0 0
        %1519 = vmatpush1.bf16.msra.mxu0 %v1484
        %1520 = vmatprep.subr.bf16.mxu0 0
        %1521 = vmatpush1.bf16.msra.mxu0 %v1485
        %1522 = vmatprep.subr.bf16.mxu0 0
        %1523 = vmatpush1.bf16.msra.mxu0 %v1486
        %1524 = vmatprep.subr.bf16.mxu0 0
        %1525 = vmatpush1.bf16.msra.mxu0 %v1487
        %1526 = vmatprep.subr.bf16.mxu0 0
        %1527 = vmatpush1.bf16.msra.mxu0 %v1488
        %1528 = vmatprep.subr.bf16.mxu0 0
        %1529 = vmatpush1.bf16.msra.mxu0 %v1489
        %1530 = vmatprep.subr.bf16.mxu0 0
        %1531 = vmatpush1.bf16.msra.mxu0 %v1490
        %1532 = vmatprep.subr.bf16.mxu0 0
        %1533 = vmatpush1.bf16.msra.mxu0 %v1491
        %1534 = vmatprep.subr.bf16.mxu0 0
        %1535 = vmatpush1.bf16.msra.mxu0 %v1492
        %1536 = vmatprep.subr.bf16.mxu0 0
        %1537 = vmatpush1.bf16.msra.mxu0 %v1493
        %1538 = vmatprep.subr.bf16.mxu0 0
        %1539 = vmatpush1.bf16.msra.mxu0 %v1494
        %1540 = vmatprep.subr.bf16.mxu0 0
        %1541 = vmatpush1.bf16.msra.mxu0 %v1495
        %1542 = vmatprep.subr.bf16.mxu0 0
        %1543 = vmatpush1.bf16.msra.mxu0 %v1496
        %1544 = vmatprep.subr.bf16.mxu0 0
        %1545 = vmatpush1.bf16.msra.mxu0 %v1497
        %1546 = vmatprep.mubr.bf16.mxu0 %v1417
        %1547 = vmatmul.mubr.bf16.gmra.mrb[0].mxu0 %v1416
        %v1548 = vpop.f32.mrb[0].mxu0
        %v1549 = vadd.f32 0.0, %v1548
        %v1550 = vpop.f32.mrb[0].mxu0
        %v1551 = vpop.f32.mrb[0].mxu0
        %v1552 = vpop.f32.mrb[0].mxu0
        %1553 = vdwg.mxu0
        %v1561 = vunpack.c.l.b16 %v1376
        %v1562 = vunpack.c.l.b16 %v1377
        %v1563 = vunpack.c.l.b16 %v1378
        %v1564 = vunpack.c.l.b16 %v1379
        %v1565 = vunpack.c.l.b16 %v1380
        %v1566 = vunpack.c.l.b16 %v1381
        %v1567 = vunpack.c.l.b16 %v1382
        %v1568 = vpack.c.b16 %v1562, %v1561
        %v1569 = vpack.c.b16 %v1564, %v1563
        %v1570 = vpack.c.b16 %v1566, %v1565
        %v1571 = vpack.c.b16 %v1567, %v1567
        %v1576 = vsel %vm297, %v1383, 0
        %v1579 = vsel %vm301, %v1571, 0
        %1581 = vmatprep.subr.bf16.mxu0 0
        %1582 = vmatpush1.bf16.msra.mxu0 %v1568
        %1583 = vmatprep.subr.bf16.mxu0 0
        %1584 = vmatpush1.bf16.msra.mxu0 %v1569
        %1585 = vmatprep.subr.bf16.mxu0 0
        %1586 = vmatpush1.bf16.msra.mxu0 %v1570
        %1587 = vmatprep.subr.bf16.mxu0 0
        %1588 = vmatpush1.bf16.msra.mxu0 %v1579
        %1589 = vmatprep.subr.bf16.mxu0 0
        %1590 = vmatpush1.bf16.msra.mxu0 0
        %1591 = vmatprep.subr.bf16.mxu0 0
        %1592 = vmatpush1.bf16.msra.mxu0 0
        %1593 = vmatprep.subr.bf16.mxu0 0
        %1594 = vmatpush1.bf16.msra.mxu0 0
        %1595 = vmatprep.subr.bf16.mxu0 0
        %1596 = vmatpush1.bf16.msra.mxu0 0
        %1597 = vmatprep.subr.bf16.mxu0 0
        %1598 = vmatpush1.bf16.msra.mxu0 0
        %1599 = vmatprep.subr.bf16.mxu0 0
        %1600 = vmatpush1.bf16.msra.mxu0 0
        %1601 = vmatprep.subr.bf16.mxu0 0
        %1602 = vmatpush1.bf16.msra.mxu0 0
        %1603 = vmatprep.subr.bf16.mxu0 0
        %1604 = vmatpush1.bf16.msra.mxu0 0
        %1605 = vmatprep.subr.bf16.mxu0 0
        %1606 = vmatpush1.bf16.msra.mxu0 0
        %1607 = vmatprep.subr.bf16.mxu0 0
        %1608 = vmatpush1.bf16.msra.mxu0 0
        %1609 = vmatprep.subr.bf16.mxu0 0
        %1610 = vmatpush1.bf16.msra.mxu0 0
        %1611 = vmatprep.subr.bf16.mxu0 0
        %1612 = vmatpush1.bf16.msra.mxu0 0
        %1613 = vmatprep.mubr.bf16.mxu0 0
        %1614 = vmatmul.mubr.bf16.gmra.mrb[0].mxu0 %v1576
        %v1615 = vpop.f32.mrb[0].mxu0
        %v1616 = vadd.f32 %v1549, %v1615
        %v1617 = vpop.f32.mrb[0].mxu0
        %v1618 = vpop.f32.mrb[0].mxu0
        %v1619 = vpop.f32.mrb[0].mxu0
        %1620 = vdwg.mxu0
        %v1621 = vld [vmem:[#allocation2 + $0x4] sm:$0x2]
        %v1622 = vunpack.c.l.bf16 %v1621
        %v1623 = vlaneseq
        %v1624 = vshrl.u32 %v1623, 7
        %v1625 = vsub.s32 2, %v1624
        %v1626 = vrot.slane %v1622, %v1625
        %v1627 = vadd.f32 %v1616, %v1626
        %v1628 = vmax.f32 %v1627, 0.0
        %v1629 = vld [vmem:[#allocation2 + $0x24] sm:$0xf]
        %v1630 = vld [vmem:[#allocation2 + $0x28] sm:$0xf]
        %v1631 = vld [vmem:[#allocation2 + $0x2c] sm:$0xf]
        %v1632 = vld [vmem:[#allocation2 + $0x30] sm:$0xf]
        %v1633 = vld [vmem:[#allocation2 + $0x34] sm:$0xf]
        %v1634 = vld [vmem:[#allocation2 + $0x38] sm:$0xf]
        %v1635 = vld [vmem:[#allocation2 + $0x3c] sm:$0xf]
        %v1636 = vld [vmem:[#allocation2 + $0x40] sm:$0xf]
        %v1637 = vld [vmem:[#allocation2 + $0x44] sm:$0xf]
        %v1638 = vld [vmem:[#allocation2 + $0x48] sm:$0xf]
        %v1639 = vld [vmem:[#allocation2 + $0x4c] sm:$0xf]
        %v1640 = vld [vmem:[#allocation2 + $0x50] sm:$0xf]
        %v1641 = vld [vmem:[#allocation2 + $0x54] sm:$0xf]
        %v1642 = vld [vmem:[#allocation2 + $0x58] sm:$0xf]
        %v1643 = vld [vmem:[#allocation2 + $0x5c] sm:$0xf]
        %v1644 = vld [vmem:[#allocation2 + $0x60] sm:$0xf]
        %v1645 = vpack.c.bf16 %v1628, %v1628
        %v1646 = vlaneseq
        %v1647 = vshrl.u32 %v1646, 7
        %v1648 = vsub.s32 3, %v1647
        %v1649 = vrot.slane %v1622, %v1648
        %v1666 = vunpack.c.l.b16 %v1629
        %v1667 = vunpack.c.l.b16 %v1630
        %v1668 = vunpack.c.l.b16 %v1631
        %v1669 = vunpack.c.l.b16 %v1632
        %v1670 = vunpack.c.l.b16 %v1633
        %v1671 = vunpack.c.l.b16 %v1634
        %v1672 = vunpack.c.l.b16 %v1635
        %v1673 = vunpack.c.l.b16 %v1636
        %v1674 = vunpack.c.l.b16 %v1637
        %v1675 = vunpack.c.l.b16 %v1638
        %v1676 = vunpack.c.l.b16 %v1639
        %v1677 = vunpack.c.l.b16 %v1640
        %v1678 = vunpack.c.l.b16 %v1641
        %v1679 = vunpack.c.l.b16 %v1642
        %v1680 = vunpack.c.l.b16 %v1643
        %v1681 = vunpack.c.l.b16 %v1644
        %v1682 = vpack.c.b16 %v1667, %v1666
        %v1683 = vpack.c.b16 %v1669, %v1668
        %v1684 = vpack.c.b16 %v1671, %v1670
        %v1685 = vpack.c.b16 %v1673, %v1672
        %v1686 = vpack.c.b16 %v1675, %v1674
        %v1687 = vpack.c.b16 %v1677, %v1676
        %v1688 = vpack.c.b16 %v1679, %v1678
        %v1689 = vpack.c.b16 %v1681, %v1680
        %1698 = vmatprep.subr.bf16.mxu0 0
        %1699 = vmatpush1.bf16.msra.mxu0 %v1682
        %1700 = vmatprep.subr.bf16.mxu0 0
        %1701 = vmatpush1.bf16.msra.mxu0 %v1683
        %1702 = vmatprep.subr.bf16.mxu0 0
        %1703 = vmatpush1.bf16.msra.mxu0 %v1684
        %1704 = vmatprep.subr.bf16.mxu0 0
        %1705 = vmatpush1.bf16.msra.mxu0 %v1685
        %1706 = vmatprep.subr.bf16.mxu0 0
        %1707 = vmatpush1.bf16.msra.mxu0 %v1686
        %1708 = vmatprep.subr.bf16.mxu0 0
        %1709 = vmatpush1.bf16.msra.mxu0 %v1687
        %1710 = vmatprep.subr.bf16.mxu0 0
        %1711 = vmatpush1.bf16.msra.mxu0 %v1688
        %1712 = vmatprep.subr.bf16.mxu0 0
        %1713 = vmatpush1.bf16.msra.mxu0 %v1689
        %1714 = vmatprep.subr.bf16.mxu0 0
        %1715 = vmatpush1.bf16.msra.mxu0 0
        %1716 = vmatprep.subr.bf16.mxu0 0
        %1717 = vmatpush1.bf16.msra.mxu0 0
        %1718 = vmatprep.subr.bf16.mxu0 0
        %1719 = vmatpush1.bf16.msra.mxu0 0
        %1720 = vmatprep.subr.bf16.mxu0 0
        %1721 = vmatpush1.bf16.msra.mxu0 0
        %1722 = vmatprep.subr.bf16.mxu0 0
        %1723 = vmatpush1.bf16.msra.mxu0 0
        %1724 = vmatprep.subr.bf16.mxu0 0
        %1725 = vmatpush1.bf16.msra.mxu0 0
        %1726 = vmatprep.subr.bf16.mxu0 0
        %1727 = vmatpush1.bf16.msra.mxu0 0
        %1728 = vmatprep.subr.bf16.mxu0 0
        %1729 = vmatpush1.bf16.msra.mxu0 0
        %1730 = vmatprep.mubr.bf16.mxu0 0
        %1731 = vmatmul.mubr.bf16.gmra.mrb[0].mxu0 %v1645
        %v1732 = vpop.f32.mrb[0].mxu0
        %v1733 = vadd.f32 %v1649, %v1732
        %v1734 = vpop.f32.mrb[0].mxu0
        %v1735 = vpop.f32.mrb[0].mxu0
        %v1736 = vpop.f32.mrb[0].mxu0
        %1737 = vdwg.mxu0
        %v1738 = vmax.f32 %v1733, 0.0
        %v1739 = vld [vmem:[#allocation2 + $0x64] sm:$0xf]
        %v1740 = vld [vmem:[#allocation2 + $0x68] sm:$0xf]
        %v1741 = vld [vmem:[#allocation2 + $0x6c] sm:$0xf]
        %v1742 = vld [vmem:[#allocation2 + $0x70] sm:$0xf]
        %v1743 = vld [vmem:[#allocation2 + $0x74] sm:$0xf]
        %v1744 = vld [vmem:[#allocation2 + $0x78] sm:$0xf]
        %v1745 = vld [vmem:[#allocation2 + $0x7c] sm:$0xf]
        %v1746 = vld [vmem:[#allocation2 + $0x80] sm:$0xf]
        %v1747 = vpack.c.bf16 %v1738, %v1738
        %v1748 = vunpack.c.l.bf16 %v443
        %v1749 = vlaneseq
        %v1750 = vshrl.u32 %v1749, 7
        %v1751 = vsub.s32 4, %v1750
        %v1752 = vrot.slane %v1748, %v1751
        %v1761 = vunpack.c.l.b16 %v1739
        %v1762 = vunpack.c.l.b16 %v1740
        %v1763 = vunpack.c.l.b16 %v1741
        %v1764 = vunpack.c.l.b16 %v1742
        %v1765 = vunpack.c.l.b16 %v1743
        %v1766 = vunpack.c.l.b16 %v1744
        %v1767 = vunpack.c.l.b16 %v1745
        %v1768 = vunpack.c.l.b16 %v1746
        %v1769 = vpack.c.b16 %v1762, %v1761
        %v1770 = vpack.c.b16 %v1764, %v1763
        %v1771 = vpack.c.b16 %v1766, %v1765
        %v1772 = vpack.c.b16 %v1768, %v1767
        %v1778 = vsel %vm543, %v1747, 0
        %1780 = vmatprep.subr.bf16.mxu0 0
        %1781 = vmatpush1.bf16.msra.mxu0 %v1769
        %1782 = vmatprep.subr.bf16.mxu0 0
        %1783 = vmatpush1.bf16.msra.mxu0 %v1770
        %1784 = vmatprep.subr.bf16.mxu0 0
        %1785 = vmatpush1.bf16.msra.mxu0 %v1771
        %1786 = vmatprep.subr.bf16.mxu0 0
        %1787 = vmatpush1.bf16.msra.mxu0 %v1772
        %1788 = vmatprep.subr.bf16.mxu0 0
        %1789 = vmatpush1.bf16.msra.mxu0 0
        %1790 = vmatprep.subr.bf16.mxu0 0
        %1791 = vmatpush1.bf16.msra.mxu0 0
        %1792 = vmatprep.subr.bf16.mxu0 0
        %1793 = vmatpush1.bf16.msra.mxu0 0
        %1794 = vmatprep.subr.bf16.mxu0 0
        %1795 = vmatpush1.bf16.msra.mxu0 0
        %1796 = vmatprep.subr.bf16.mxu0 0
        %1797 = vmatpush1.bf16.msra.mxu0 0
        %1798 = vmatprep.subr.bf16.mxu0 0
        %1799 = vmatpush1.bf16.msra.mxu0 0
        %1800 = vmatprep.subr.bf16.mxu0 0
        %1801 = vmatpush1.bf16.msra.mxu0 0
        %1802 = vmatprep.subr.bf16.mxu0 0
        %1803 = vmatpush1.bf16.msra.mxu0 0
        %1804 = vmatprep.subr.bf16.mxu0 0
        %1805 = vmatpush1.bf16.msra.mxu0 0
        %1806 = vmatprep.subr.bf16.mxu0 0
        %1807 = vmatpush1.bf16.msra.mxu0 0
        %1808 = vmatprep.subr.bf16.mxu0 0
        %1809 = vmatpush1.bf16.msra.mxu0 0
        %1810 = vmatprep.subr.bf16.mxu0 0
        %1811 = vmatpush1.bf16.msra.mxu0 0
        %1812 = vmatprep.mubr.bf16.mxu0 0
        %1813 = vmatmul.mubr.bf16.gmra.mrb[0].mxu0 %v1778
        %v1814 = vpop.f32.mrb[0].mxu0
        %v1815 = vadd.f32 %v1752, %v1814
        %v1816 = vpop.f32.mrb[0].mxu0
        %v1817 = vpop.f32.mrb[0].mxu0
        %v1818 = vpop.f32.mrb[0].mxu0
        %1819 = vdwg.mxu0
        %1820 = vst [vmem:[%s229] sm:$0xff] %v1815
        %p1821 = scmp.lt.s32.totalorder %s16, 1
        %s1822 = scalar_select %p1821, %s16, 1
        %s1823 = smul.addr %s1822, 8
        %s1824 = scalar_lea.vmem %s4, %s1823
        // Predicated region
        $region41: #{arbitrage_forward.1} parent=35 // pred_check
          %p1825 = pneg %p128
        $region42: #{arbitrage_forward.1} parent=35 // pred_check_branch
          %1827 = sbr.rel (%p1825) target = $region44
        $region43: #{arbitrage_forward.1} parent=35 // pred_region
          _
        $region44: #{arbitrage_forward.1} parent=35 // pred_fallthru
          _
      $region36: #{arbitrage_forward.1} parent=5 // pred_fallthru
        _
      %p1828 = scmp.le.s32.totalorder 2, %s11
      // Predicated region
      $region45: #{arbitrage_forward.1} parent=5 // pred_check
        %p1829 = pneg %p1828
      $region46: #{arbitrage_forward.1} parent=5 // pred_check_branch
        %1831 = sbr.rel (%p1829) target = $region48
      $region47: #{arbitrage_forward.1} parent=5 // pred_region
        %s1832 = ssub.s32 %s11, 2
        // Predicated region
        $region49: #{arbitrage_forward.1} parent=47 // pred_check
          %p1833 = pneg %p134
        $region50: #{arbitrage_forward.1} parent=47 // pred_check_branch
          %1835 = sbr.rel (%p1833) target = $region52
        $region51: #{arbitrage_forward.1} parent=47 // pred_region
          %p1836 = scmp.lt.s32.totalorder %s17, 1
          %s1837 = scalar_select %p1836, %s17, 1
          %s1838 = smul.addr %s1837, 8
          %s1839 = scalar_lea.vmem %s4, %s1838
        $region52: #{arbitrage_forward.1} parent=47 // pred_fallthru
          _
      $region48: #{arbitrage_forward.1} parent=5 // pred_fallthru
        _
    $region6: #{arbitrage_forward.1} parent=1 // loop_footer
      %s15 = sadd.s32 1, %s11
    $region7: #{arbitrage_forward.1} parent=1 // loop_footer_branch
      %10 = sbr.rel target = $region3
    $region8: #{arbitrage_forward.1} parent=1 // loop_exit
      _
    %1840 = vsyncpa [#allocation3], 1
    %s1841 = scalar_lea.sflag [#allocation3], 1
    %1842 = vsyncpa %s1841, 1

</llo_original>
